<compile_context>
chip_gen: v7x
topology: tpu7x:2x2x1
jax: 0.10.0
libtpu: 0.0.40
codegen_flags: <defaults>
</compile_context>

<pallas_src>
import functools

import jax
import jax.numpy as jnp
import numpy as np
from jax.experimental import pallas as pl
from jax.experimental.pallas import tpu as pltpu


def _mix_heads(stacked, coeff_ref, g, heads):
    """out = sum_h coeff_ref[g, h] * stacked[h]  (vector broadcast, no SMEM scalar loops)."""
    prod = stacked * coeff_ref[g]            # (h, 1, 1) broadcast against (h, tq, n)
    acc = prod[0]
    for hh in range(1, heads):
        acc = acc + prod[hh]
    return acc                               # (tq, n)


def _attention_kernel(x_kv_ref, x_q_ref, wq_ref, wk_ref, wv_ref,
                      mix_pre_ref, mix_post_ref, wo_ref, bo_ref,
                      o_ref,
                      k_sc, v_sc,
                      *, heads, dim_head, scale):
    f32, bf16 = jnp.float32, jnp.bfloat16

    # ---- K/V projection: once per batch element (first q tile), head-batched layout.
    @pl.when(pl.program_id(1) == 0)
    def _():
        xkv = x_kv_ref[0].astype(bf16)                                   # (n, dim)
        k2 = jnp.dot(xkv, wk_ref[...], preferred_element_type=f32)       # (n, inner)
        v2 = jnp.dot(xkv, wv_ref[...], preferred_element_type=f32)       # (n, inner)
        k_sc[...] = jnp.stack(
            [k2[:, hh * dim_head:(hh + 1) * dim_head] for hh in range(heads)],
            axis=0).astype(bf16)                                         # (h, n, d)
        v_sc[...] = jnp.stack(
            [v2[:, hh * dim_head:(hh + 1) * dim_head] for hh in range(heads)],
            axis=0).astype(bf16)

    # ---- Q projection for this query tile (softmax scale folded into q, f32 accum).
    xq = x_q_ref[0].astype(bf16)                                         # (tq, dim)
    q2 = jnp.dot(xq, wq_ref[...], preferred_element_type=f32) * scale    # (tq, inner)
    q3 = jnp.stack(
        [q2[:, hh * dim_head:(hh + 1) * dim_head] for hh in range(heads)],
        axis=0).astype(bf16)                                             # (h, tq, d)
    k3 = k_sc[...]
    v3 = v_sc[...]

    # ---- scores for all heads in one batched MXU einsum (no per-head k.T transpose).
    dots = jnp.einsum('hqd,hkd->hqk', q3, k3,
                      preferred_element_type=f32)                        # (h, tq, n)

    # ---- talking heads, pre-softmax:  mixed[g] = sum_h mix_pre[h, g] * dots[h]
    mixed = jnp.stack([_mix_heads(dots, mix_pre_ref, g, heads)
                       for g in range(heads)], axis=0)                   # (h, tq, n)

    # ---- softmax over keys (f32 math, EUP approx reciprocal).
    m = jnp.max(mixed, axis=-1, keepdims=True)
    e = jnp.exp(mixed - m)
    attn = e * pl.reciprocal(jnp.sum(e, axis=-1, keepdims=True), approx=True)

    # ---- talking heads, post-softmax.
    attn2 = jnp.stack([_mix_heads(attn, mix_post_ref, g, heads)
                       for g in range(heads)], axis=0)                   # (h, tq, n)

    # ---- attend to values (batched MXU), merge heads, output projection (+ bias).
    out3 = jnp.einsum('hqk,hkd->hqd', attn2.astype(bf16), v3,
                      preferred_element_type=f32)                        # (h, tq, d)
    out2 = jnp.concatenate([out3[hh] for hh in range(heads)], axis=-1)   # (tq, inner)
    y = jnp.dot(out2.astype(bf16), wo_ref[...],
                preferred_element_type=f32) + bo_ref[...]                # (tq, dim) f32
    o_ref[0] = y.astype(o_ref.dtype)                                     # lane-dense store


def cait_attention(x, params, *, heads, dim_head, q_tile=128):
    b, n, dim = x.shape
    inner = heads * dim_head
    scale = dim_head ** -0.5

    # query-axis tiling keeps the (heads, tq, n) score intermediates inside VMEM
    if n <= q_tile:
        tq = n
    elif n % q_tile == 0:
        tq = q_tile
    else:
        tq = n  # TODO(synk): pad / mask ragged query tiles when n % q_tile != 0
    nt = n // tq

    bf16 = jnp.bfloat16
    wq = params["wq"].astype(bf16)
    wk = params["wkv"][:, :inner].astype(bf16)   # split fused KV outside the kernel
    wv = params["wkv"][:, inner:].astype(bf16)   # -> no mid-lane slice per grid step
    wo = params["wo"].astype(bf16)
    bo = params["bo"].astype(jnp.float32).reshape(1, dim)
    # Pre-transpose the talking-heads tables so the kernel reads one output head's
    # coefficient column as an (h, 1, 1) vector (vector broadcast, no SMEM scalars).
    mix_pre_t = jnp.transpose(params["mix_pre"]).astype(jnp.float32)[:, :, None, None]
    mix_post_t = jnp.transpose(params["mix_post"]).astype(jnp.float32)[:, :, None, None]

    kern = functools.partial(_attention_kernel, heads=heads, dim_head=dim_head,
                             scale=scale)

    grid_spec = pltpu.PrefetchScalarGridSpec(
        num_scalar_prefetch=0,
        grid=(b, nt),
        in_specs=[
            pl.BlockSpec((1, n, dim), lambda bi, ti: (bi, 0, 0)),    # x for K/V (resident per b)
            pl.BlockSpec((1, tq, dim), lambda bi, ti: (bi, ti, 0)),  # x query tile
            pl.BlockSpec((dim, inner), lambda bi, ti: (0, 0)),       # wq (held resident)
            pl.BlockSpec((dim, inner), lambda bi, ti: (0, 0)),       # wk
            pl.BlockSpec((dim, inner), lambda bi, ti: (0, 0)),       # wv
            pl.BlockSpec((heads, heads, 1, 1), lambda bi, ti: (0, 0, 0, 0)),  # mix_pre^T
            pl.BlockSpec((heads, heads, 1, 1), lambda bi, ti: (0, 0, 0, 0)),  # mix_post^T
            pl.BlockSpec((inner, dim), lambda bi, ti: (0, 0)),       # wo
            pl.BlockSpec((1, dim), lambda bi, ti: (0, 0)),           # bo
        ],
        out_specs=pl.BlockSpec((1, tq, dim), lambda bi, ti: (bi, ti, 0)),
        scratch_shapes=[
            pltpu.VMEM((heads, n, dim_head), bf16),   # K, head-batched, lives across q tiles
            pltpu.VMEM((heads, n, dim_head), bf16),   # V
        ],
    )

    return pl.pallas_call(
        kern,
        out_shape=jax.ShapeDtypeStruct((b, n, dim), x.dtype),
        grid_spec=grid_spec,
        compiler_params=pltpu.CompilerParams(
            dimension_semantics=("parallel", "arbitrary"),
            vmem_limit_bytes=48 * 1024 * 1024),
    )(x, x, wq, wk, wv, mix_pre_t, mix_post_t, wo, bo)


def reference_attention(x, params, *, heads, dim_head):
    """Pure-JAX (f32) mirror of the PyTorch forward, for correctness checking."""
    b, n, dim = x.shape
    inner = heads * dim_head
    scale = dim_head ** -0.5
    q = x @ params["wq"]
    kv = x @ params["wkv"]
    k, v = kv[..., :inner], kv[..., inner:]

    def split(t):
        return t.reshape(b, n, heads, dim_head).transpose(0, 2, 1, 3)

    q, k, v = split(q), split(k), split(v)
    dots = jnp.einsum("bhid,bhjd->bhij", q, k) * scale
    dots = jnp.einsum("bhij,hg->bgij", dots, params["mix_pre"])
    attn = jax.nn.softmax(dots, axis=-1)
    attn = jnp.einsum("bhij,hg->bgij", attn, params["mix_post"])
    out = jnp.einsum("bhij,bhjd->bhid", attn, v)
    out = out.transpose(0, 2, 1, 3).reshape(b, n, inner)
    return out @ params["wo"] + params["bo"]


if __name__ == "__main__":
    # small shapes consistent with the module's forward (lane-dense dim)
    batch, seq, dim = 2, 16, 128
    heads, dim_head = 4, 32
    inner = heads * dim_head

    key = jax.random.PRNGKey(0)
    k_x, k_q, k_kv, k_pre, k_post, k_wo, k_bo = jax.random.split(key, 7)

    x = jax.random.normal(k_x, (batch, seq, dim), dtype=jnp.float32)
    params = {
        # nn.Linear(dim, inner, bias=False) — stored transposed: (dim, inner)
        "wq": 0.05 * jax.random.normal(k_q, (dim, inner), dtype=jnp.float32),
        # nn.Linear(dim, 2*inner, bias=False)
        "wkv": 0.05 * jax.random.normal(k_kv, (dim, 2 * inner), dtype=jnp.float32),
        # talking-heads mixing matrices, torch.randn(heads, heads)
        "mix_pre": jax.random.normal(k_pre, (heads, heads), dtype=jnp.float32),
        "mix_post": jax.random.normal(k_post, (heads, heads), dtype=jnp.float32),
        # nn.Linear(inner, dim) with bias
        "wo": 0.05 * jax.random.normal(k_wo, (inner, dim), dtype=jnp.float32),
        "bo": 0.05 * jax.random.normal(k_bo, (dim,), dtype=jnp.float32),
    }

    out = cait_attention(x, params, heads=heads, dim_head=dim_head)
    out = jax.block_until_ready(out)

    ref = reference_attention(x, params, heads=heads, dim_head=dim_head)
    # bf16 MXU operands with f32 accumulation -> compare against f32 reference
    np.testing.assert_allclose(np.asarray(out), np.asarray(ref), atol=2e-2, rtol=2e-2)

    print("KERNEL_OK")
</pallas_src>

<mosaic_0001>
module attributes {stable_mosaic.version = 11 : i64} {
  func.func @_attention_kernel(%arg0: i32, %arg1: i32, %arg2: memref<1x16x128xf32, #tpu.memory_space<vmem>>, %arg3: memref<1x16x128xf32, #tpu.memory_space<vmem>>, %arg4: memref<128x128xbf16, #tpu.memory_space<vmem>>, %arg5: memref<128x128xbf16, #tpu.memory_space<vmem>>, %arg6: memref<128x128xbf16, #tpu.memory_space<vmem>>, %arg7: memref<4x4x1x1xf32, #tpu.memory_space<vmem>>, %arg8: memref<4x4x1x1xf32, #tpu.memory_space<vmem>>, %arg9: memref<128x128xbf16, #tpu.memory_space<vmem>>, %arg10: memref<1x128xf32, #tpu.memory_space<vmem>>, %arg11: memref<1x16x128xf32, #tpu.memory_space<vmem>>, %arg12: memref<4x16x32xbf16, #tpu.memory_space<vmem>>, %arg13: memref<4x16x32xbf16, #tpu.memory_space<vmem>>) attributes {dimension_semantics = [#tpu.dimension_semantics<parallel>, #tpu.dimension_semantics<arbitrary>], iteration_bounds = array<i64: 2, 1>, scalar_prefetch = 0 : i64, scratch_operands = 2 : i64, tpu.core_type = #tpu.core_type<tc>, window_params = [{transform_indices = @transform_0, window_bounds = array<i64: 1, 16, 128>}, {transform_indices = @transform_1, window_bounds = array<i64: 1, 16, 128>}, {pipeline_mode = #tpu.pipeline_mode<synchronous>, transform_indices = @transform_2, window_bounds = array<i64: 128, 128>}, {pipeline_mode = #tpu.pipeline_mode<synchronous>, transform_indices = @transform_3, window_bounds = array<i64: 128, 128>}, {pipeline_mode = #tpu.pipeline_mode<synchronous>, transform_indices = @transform_4, window_bounds = array<i64: 128, 128>}, {pipeline_mode = #tpu.pipeline_mode<synchronous>, transform_indices = @transform_5, window_bounds = array<i64: 4, 4, 1, 1>}, {pipeline_mode = #tpu.pipeline_mode<synchronous>, transform_indices = @transform_6, window_bounds = array<i64: 4, 4, 1, 1>}, {pipeline_mode = #tpu.pipeline_mode<synchronous>, transform_indices = @transform_7, window_bounds = array<i64: 128, 128>}, {pipeline_mode = #tpu.pipeline_mode<synchronous>, transform_indices = @transform_8, window_bounds = array<i64: 1, 128>}, {transform_indices = @transform_9, window_bounds = array<i64: 1, 16, 128>}]} {
    %c0_i32 = arith.constant 0 : i32
    %0 = arith.cmpi eq, %arg1, %c0_i32 : i32
    %1 = arith.extui %0 : i1 to i32
    %c0_i32_0 = arith.constant 0 : i32
    %2 = arith.cmpi ne, %1, %c0_i32_0 : i32
    scf.if %2 {
      %c0_53 = arith.constant 0 : index
      %c0_54 = arith.constant 0 : index
      %c0_55 = arith.constant 0 : index
      %183 = vector.load %arg2[%c0_53, %c0_54, %c0_55] : memref<1x16x128xf32, #tpu.memory_space<vmem>>, vector<1x16x128xf32>
      %184 = vector.shape_cast %183 : vector<1x16x128xf32> to vector<16x128xf32>
      %185 = arith.truncf %184 : vector<16x128xf32> to vector<16x128xbf16>
      %c0_56 = arith.constant 0 : index
      %c0_57 = arith.constant 0 : index
      %186 = vector.load %arg5[%c0_56, %c0_57] : memref<128x128xbf16, #tpu.memory_space<vmem>>, vector<128x128xbf16>
      %cst_58 = arith.constant dense<0.000000e+00> : vector<16x128xf32>
      %187 = tpu.matmul %185, %186, %cst_58 {dimension_numbers = #tpu.dot_dimension_numbers<[1], [0], [0], [1], [0, 0, 1, 1], [], []>} : vector<16x128xbf16>, vector<128x128xbf16>, vector<16x128xf32> -> vector<16x128xf32>
      %c0_59 = arith.constant 0 : index
      %c0_60 = arith.constant 0 : index
      %188 = vector.load %arg6[%c0_59, %c0_60] : memref<128x128xbf16, #tpu.memory_space<vmem>>, vector<128x128xbf16>
      %cst_61 = arith.constant dense<0.000000e+00> : vector<16x128xf32>
      %189 = tpu.matmul %185, %188, %cst_61 {dimension_numbers = #tpu.dot_dimension_numbers<[1], [0], [0], [1], [0, 0, 1, 1], [], []>} : vector<16x128xbf16>, vector<128x128xbf16>, vector<16x128xf32> -> vector<16x128xf32>
      %190 = vector.extract_strided_slice %187 {offsets = [0, 0], sizes = [16, 32], strides = [1, 1]} : vector<16x128xf32> to vector<16x32xf32>
      %191 = vector.extract_strided_slice %187 {offsets = [0, 32], sizes = [16, 32], strides = [1, 1]} : vector<16x128xf32> to vector<16x32xf32>
      %192 = vector.extract_strided_slice %187 {offsets = [0, 64], sizes = [16, 32], strides = [1, 1]} : vector<16x128xf32> to vector<16x32xf32>
      %193 = vector.extract_strided_slice %187 {offsets = [0, 96], sizes = [16, 32], strides = [1, 1]} : vector<16x128xf32> to vector<16x32xf32>
      %194 = vector.shape_cast %190 : vector<16x32xf32> to vector<1x16x32xf32>
      %195 = vector.shape_cast %191 : vector<16x32xf32> to vector<1x16x32xf32>
      %196 = vector.shape_cast %192 : vector<16x32xf32> to vector<1x16x32xf32>
      %197 = vector.shape_cast %193 : vector<16x32xf32> to vector<1x16x32xf32>
      %198 = tpu.concatenate %194, %195, %196, %197 in 0 : vector<1x16x32xf32>, vector<1x16x32xf32>, vector<1x16x32xf32>, vector<1x16x32xf32> -> vector<4x16x32xf32>
      %199 = arith.truncf %198 : vector<4x16x32xf32> to vector<4x16x32xbf16>
      %c0_62 = arith.constant 0 : index
      %c0_63 = arith.constant 0 : index
      %c0_64 = arith.constant 0 : index
      %200 = vector.load %arg12[%c0_62, %c0_63, %c0_64] : memref<4x16x32xbf16, #tpu.memory_space<vmem>>, vector<4x16x32xbf16>
      tpu.vector_store %arg12[%c0_62, %c0_63, %c0_64], %199 {strides = array<i32>} : memref<4x16x32xbf16, #tpu.memory_space<vmem>>, vector<4x16x32xbf16>,
      %201 = vector.extract_strided_slice %189 {offsets = [0, 0], sizes = [16, 32], strides = [1, 1]} : vector<16x128xf32> to vector<16x32xf32>
      %202 = vector.extract_strided_slice %189 {offsets = [0, 32], sizes = [16, 32], strides = [1, 1]} : vector<16x128xf32> to vector<16x32xf32>
      %203 = vector.extract_strided_slice %189 {offsets = [0, 64], sizes = [16, 32], strides = [1, 1]} : vector<16x128xf32> to vector<16x32xf32>
      %204 = vector.extract_strided_slice %189 {offsets = [0, 96], sizes = [16, 32], strides = [1, 1]} : vector<16x128xf32> to vector<16x32xf32>
      %205 = vector.shape_cast %201 : vector<16x32xf32> to vector<1x16x32xf32>
      %206 = vector.shape_cast %202 : vector<16x32xf32> to vector<1x16x32xf32>
      %207 = vector.shape_cast %203 : vector<16x32xf32> to vector<1x16x32xf32>
      %208 = vector.shape_cast %204 : vector<16x32xf32> to vector<1x16x32xf32>
      %209 = tpu.concatenate %205, %206, %207, %208 in 0 : vector<1x16x32xf32>, vector<1x16x32xf32>, vector<1x16x32xf32>, vector<1x16x32xf32> -> vector<4x16x32xf32>
      %210 = arith.truncf %209 : vector<4x16x32xf32> to vector<4x16x32xbf16>
      %c0_65 = arith.constant 0 : index
      %c0_66 = arith.constant 0 : index
      %c0_67 = arith.constant 0 : index
      %211 = vector.load %arg13[%c0_65, %c0_66, %c0_67] : memref<4x16x32xbf16, #tpu.memory_space<vmem>>, vector<4x16x32xbf16>
      tpu.vector_store %arg13[%c0_65, %c0_66, %c0_67], %210 {strides = array<i32>} : memref<4x16x32xbf16, #tpu.memory_space<vmem>>, vector<4x16x32xbf16>,
    } else {
    }
    %c0 = arith.constant 0 : index
    %c0_1 = arith.constant 0 : index
    %c0_2 = arith.constant 0 : index
    %3 = vector.load %arg3[%c0, %c0_1, %c0_2] : memref<1x16x128xf32, #tpu.memory_space<vmem>>, vector<1x16x128xf32>
    %4 = vector.shape_cast %3 : vector<1x16x128xf32> to vector<16x128xf32>
    %5 = arith.truncf %4 : vector<16x128xf32> to vector<16x128xbf16>
    %c0_3 = arith.constant 0 : index
    %c0_4 = arith.constant 0 : index
    %6 = vector.load %arg4[%c0_3, %c0_4] : memref<128x128xbf16, #tpu.memory_space<vmem>>, vector<128x128xbf16>
    %cst = arith.constant dense<0.000000e+00> : vector<16x128xf32>
    %7 = tpu.matmul %5, %6, %cst {dimension_numbers = #tpu.dot_dimension_numbers<[1], [0], [0], [1], [0, 0, 1, 1], [], []>} : vector<16x128xbf16>, vector<128x128xbf16>, vector<16x128xf32> -> vector<16x128xf32>
    %cst_5 = arith.constant 0.176776692 : f32
    %8 = vector.broadcast %cst_5 : f32 to vector<16x128xf32>
    %9 = arith.mulf %7, %8 : vector<16x128xf32>
    %10 = vector.extract_strided_slice %9 {offsets = [0, 0], sizes = [16, 32], strides = [1, 1]} : vector<16x128xf32> to vector<16x32xf32>
    %11 = vector.extract_strided_slice %9 {offsets = [0, 32], sizes = [16, 32], strides = [1, 1]} : vector<16x128xf32> to vector<16x32xf32>
    %12 = vector.extract_strided_slice %9 {offsets = [0, 64], sizes = [16, 32], strides = [1, 1]} : vector<16x128xf32> to vector<16x32xf32>
    %13 = vector.extract_strided_slice %9 {offsets = [0, 96], sizes = [16, 32], strides = [1, 1]} : vector<16x128xf32> to vector<16x32xf32>
    %14 = vector.shape_cast %10 : vector<16x32xf32> to vector<1x16x32xf32>
    %15 = vector.shape_cast %11 : vector<16x32xf32> to vector<1x16x32xf32>
    %16 = vector.shape_cast %12 : vector<16x32xf32> to vector<1x16x32xf32>
    %17 = vector.shape_cast %13 : vector<16x32xf32> to vector<1x16x32xf32>
    %18 = tpu.concatenate %14, %15, %16, %17 in 0 : vector<1x16x32xf32>, vector<1x16x32xf32>, vector<1x16x32xf32>, vector<1x16x32xf32> -> vector<4x16x32xf32>
    %19 = arith.truncf %18 : vector<4x16x32xf32> to vector<4x16x32xbf16>
    %c0_6 = arith.constant 0 : index
    %c0_7 = arith.constant 0 : index
    %c0_8 = arith.constant 0 : index
    %20 = vector.load %arg12[%c0_6, %c0_7, %c0_8] : memref<4x16x32xbf16, #tpu.memory_space<vmem>>, vector<4x16x32xbf16>
    %c0_9 = arith.constant 0 : index
    %c0_10 = arith.constant 0 : index
    %c0_11 = arith.constant 0 : index
    %21 = vector.load %arg13[%c0_9, %c0_10, %c0_11] : memref<4x16x32xbf16, #tpu.memory_space<vmem>>, vector<4x16x32xbf16>
    "tpu.trace_start"() <{level = 10 : i32, message = "hqd,hkd->hqk"}> : () -> ()
    %cst_12 = arith.constant dense<0.000000e+00> : vector<4x16x16xf32>
    %22 = tpu.matmul %19, %20, %cst_12 {dimension_numbers = #tpu.dot_dimension_numbers<[2], [2], [1], [1], [0, 0, 0, 1, 1, 1], [0], [0]>} : vector<4x16x32xbf16>, vector<4x16x32xbf16>, vector<4x16x16xf32> -> vector<4x16x16xf32>
    "tpu.trace_stop"() : () -> ()
    %c0_13 = arith.constant 0 : index
    %c0_14 = arith.constant 0 : index
    %c0_15 = arith.constant 0 : index
    %c0_16 = arith.constant 0 : index
    %23 = vector.load %arg7[%c0_13, %c0_14, %c0_15, %c0_16] : memref<4x4x1x1xf32, #tpu.memory_space<vmem>>, vector<1x4x1x1xf32>
    %24 = vector.shape_cast %23 : vector<1x4x1x1xf32> to vector<4x1x1xf32>
    %25 = vector.broadcast %24 : vector<4x1x1xf32> to vector<4x16x16xf32>
    %26 = arith.mulf %22, %25 : vector<4x16x16xf32>
    %27 = vector.extract_strided_slice %26 {offsets = [0, 0, 0], sizes = [1, 16, 16], strides = [1, 1, 1]} : vector<4x16x16xf32> to vector<1x16x16xf32>
    %28 = vector.shape_cast %27 : vector<1x16x16xf32> to vector<16x16xf32>
    %29 = vector.extract_strided_slice %26 {offsets = [1, 0, 0], sizes = [1, 16, 16], strides = [1, 1, 1]} : vector<4x16x16xf32> to vector<1x16x16xf32>
    %30 = vector.shape_cast %29 : vector<1x16x16xf32> to vector<16x16xf32>
    %31 = arith.addf %28, %30 : vector<16x16xf32>
    %32 = vector.extract_strided_slice %26 {offsets = [2, 0, 0], sizes = [1, 16, 16], strides = [1, 1, 1]} : vector<4x16x16xf32> to vector<1x16x16xf32>
    %33 = vector.shape_cast %32 : vector<1x16x16xf32> to vector<16x16xf32>
    %34 = arith.addf %31, %33 : vector<16x16xf32>
    %35 = vector.extract_strided_slice %26 {offsets = [3, 0, 0], sizes = [1, 16, 16], strides = [1, 1, 1]} : vector<4x16x16xf32> to vector<1x16x16xf32>
    %36 = vector.shape_cast %35 : vector<1x16x16xf32> to vector<16x16xf32>
    %37 = arith.addf %34, %36 : vector<16x16xf32>
    %c1 = arith.constant 1 : index
    %c0_17 = arith.constant 0 : index
    %c0_18 = arith.constant 0 : index
    %c0_19 = arith.constant 0 : index
    %38 = vector.load %arg7[%c1, %c0_17, %c0_18, %c0_19] : memref<4x4x1x1xf32, #tpu.memory_space<vmem>>, vector<1x4x1x1xf32>
    %39 = vector.shape_cast %38 : vector<1x4x1x1xf32> to vector<4x1x1xf32>
    %40 = vector.broadcast %39 : vector<4x1x1xf32> to vector<4x16x16xf32>
    %41 = arith.mulf %22, %40 : vector<4x16x16xf32>
    %42 = vector.extract_strided_slice %41 {offsets = [0, 0, 0], sizes = [1, 16, 16], strides = [1, 1, 1]} : vector<4x16x16xf32> to vector<1x16x16xf32>
    %43 = vector.shape_cast %42 : vector<1x16x16xf32> to vector<16x16xf32>
    %44 = vector.extract_strided_slice %41 {offsets = [1, 0, 0], sizes = [1, 16, 16], strides = [1, 1, 1]} : vector<4x16x16xf32> to vector<1x16x16xf32>
    %45 = vector.shape_cast %44 : vector<1x16x16xf32> to vector<16x16xf32>
    %46 = arith.addf %43, %45 : vector<16x16xf32>
    %47 = vector.extract_strided_slice %41 {offsets = [2, 0, 0], sizes = [1, 16, 16], strides = [1, 1, 1]} : vector<4x16x16xf32> to vector<1x16x16xf32>
    %48 = vector.shape_cast %47 : vector<1x16x16xf32> to vector<16x16xf32>
    %49 = arith.addf %46, %48 : vector<16x16xf32>
    %50 = vector.extract_strided_slice %41 {offsets = [3, 0, 0], sizes = [1, 16, 16], strides = [1, 1, 1]} : vector<4x16x16xf32> to vector<1x16x16xf32>
    %51 = vector.shape_cast %50 : vector<1x16x16xf32> to vector<16x16xf32>
    %52 = arith.addf %49, %51 : vector<16x16xf32>
    %c2 = arith.constant 2 : index
    %c0_20 = arith.constant 0 : index
    %c0_21 = arith.constant 0 : index
    %c0_22 = arith.constant 0 : index
    %53 = vector.load %arg7[%c2, %c0_20, %c0_21, %c0_22] : memref<4x4x1x1xf32, #tpu.memory_space<vmem>>, vector<1x4x1x1xf32>
    %54 = vector.shape_cast %53 : vector<1x4x1x1xf32> to vector<4x1x1xf32>
    %55 = vector.broadcast %54 : vector<4x1x1xf32> to vector<4x16x16xf32>
    %56 = arith.mulf %22, %55 : vector<4x16x16xf32>
    %57 = vector.extract_strided_slice %56 {offsets = [0, 0, 0], sizes = [1, 16, 16], strides = [1, 1, 1]} : vector<4x16x16xf32> to vector<1x16x16xf32>
    %58 = vector.shape_cast %57 : vector<1x16x16xf32> to vector<16x16xf32>
    %59 = vector.extract_strided_slice %56 {offsets = [1, 0, 0], sizes = [1, 16, 16], strides = [1, 1, 1]} : vector<4x16x16xf32> to vector<1x16x16xf32>
    %60 = vector.shape_cast %59 : vector<1x16x16xf32> to vector<16x16xf32>
    %61 = arith.addf %58, %60 : vector<16x16xf32>
    %62 = vector.extract_strided_slice %56 {offsets = [2, 0, 0], sizes = [1, 16, 16], strides = [1, 1, 1]} : vector<4x16x16xf32> to vector<1x16x16xf32>
    %63 = vector.shape_cast %62 : vector<1x16x16xf32> to vector<16x16xf32>
    %64 = arith.addf %61, %63 : vector<16x16xf32>
    %65 = vector.extract_strided_slice %56 {offsets = [3, 0, 0], sizes = [1, 16, 16], strides = [1, 1, 1]} : vector<4x16x16xf32> to vector<1x16x16xf32>
    %66 = vector.shape_cast %65 : vector<1x16x16xf32> to vector<16x16xf32>
    %67 = arith.addf %64, %66 : vector<16x16xf32>
    %c3 = arith.constant 3 : index
    %c0_23 = arith.constant 0 : index
    %c0_24 = arith.constant 0 : index
    %c0_25 = arith.constant 0 : index
    %68 = vector.load %arg7[%c3, %c0_23, %c0_24, %c0_25] : memref<4x4x1x1xf32, #tpu.memory_space<vmem>>, vector<1x4x1x1xf32>
    %69 = vector.shape_cast %68 : vector<1x4x1x1xf32> to vector<4x1x1xf32>
    %70 = vector.broadcast %69 : vector<4x1x1xf32> to vector<4x16x16xf32>
    %71 = arith.mulf %22, %70 : vector<4x16x16xf32>
    %72 = vector.extract_strided_slice %71 {offsets = [0, 0, 0], sizes = [1, 16, 16], strides = [1, 1, 1]} : vector<4x16x16xf32> to vector<1x16x16xf32>
    %73 = vector.shape_cast %72 : vector<1x16x16xf32> to vector<16x16xf32>
    %74 = vector.extract_strided_slice %71 {offsets = [1, 0, 0], sizes = [1, 16, 16], strides = [1, 1, 1]} : vector<4x16x16xf32> to vector<1x16x16xf32>
    %75 = vector.shape_cast %74 : vector<1x16x16xf32> to vector<16x16xf32>
    %76 = arith.addf %73, %75 : vector<16x16xf32>
    %77 = vector.extract_strided_slice %71 {offsets = [2, 0, 0], sizes = [1, 16, 16], strides = [1, 1, 1]} : vector<4x16x16xf32> to vector<1x16x16xf32>
    %78 = vector.shape_cast %77 : vector<1x16x16xf32> to vector<16x16xf32>
    %79 = arith.addf %76, %78 : vector<16x16xf32>
    %80 = vector.extract_strided_slice %71 {offsets = [3, 0, 0], sizes = [1, 16, 16], strides = [1, 1, 1]} : vector<4x16x16xf32> to vector<1x16x16xf32>
    %81 = vector.shape_cast %80 : vector<1x16x16xf32> to vector<16x16xf32>
    %82 = arith.addf %79, %81 : vector<16x16xf32>
    %83 = vector.shape_cast %37 : vector<16x16xf32> to vector<1x16x16xf32>
    %84 = vector.shape_cast %52 : vector<16x16xf32> to vector<1x16x16xf32>
    %85 = vector.shape_cast %67 : vector<16x16xf32> to vector<1x16x16xf32>
    %86 = vector.shape_cast %82 : vector<16x16xf32> to vector<1x16x16xf32>
    %87 = tpu.concatenate %83, %84, %85, %86 in 0 : vector<1x16x16xf32>, vector<1x16x16xf32>, vector<1x16x16xf32>, vector<1x16x16xf32> -> vector<4x16x16xf32>
    %cst_26 = arith.constant dense<0xFF800000> : vector<4x16xf32>
    %88 = vector.multi_reduction <maximumf>, %87, %cst_26 [2] : vector<4x16x16xf32> to vector<4x16xf32>
    %89 = vector.shape_cast %88 : vector<4x16xf32> to vector<4x16x1xf32>
    %90 = vector.broadcast %89 : vector<4x16x1xf32> to vector<4x16x16xf32>
    %91 = arith.subf %87, %90 : vector<4x16x16xf32>
    %92 = math.exp %91 : vector<4x16x16xf32>
    %cst_27 = arith.constant dense<0.000000e+00> : vector<4x16xf32>
    %93 = vector.multi_reduction <add>, %92, %cst_27 [2] : vector<4x16x16xf32> to vector<4x16xf32>
    %94 = vector.shape_cast %93 : vector<4x16xf32> to vector<4x16x1xf32>
    %95 = tpu.reciprocal %94 {approx = true} : vector<4x16x1xf32> -> vector<4x16x1xf32>
    %96 = vector.broadcast %95 : vector<4x16x1xf32> to vector<4x16x16xf32>
    %97 = arith.mulf %92, %96 : vector<4x16x16xf32>
    %c0_28 = arith.constant 0 : index
    %c0_29 = arith.constant 0 : index
    %c0_30 = arith.constant 0 : index
    %c0_31 = arith.constant 0 : index
    %98 = vector.load %arg8[%c0_28, %c0_29, %c0_30, %c0_31] : memref<4x4x1x1xf32, #tpu.memory_space<vmem>>, vector<1x4x1x1xf32>
    %99 = vector.shape_cast %98 : vector<1x4x1x1xf32> to vector<4x1x1xf32>
    %100 = vector.broadcast %99 : vector<4x1x1xf32> to vector<4x16x16xf32>
    %101 = arith.mulf %97, %100 : vector<4x16x16xf32>
    %102 = vector.extract_strided_slice %101 {offsets = [0, 0, 0], sizes = [1, 16, 16], strides = [1, 1, 1]} : vector<4x16x16xf32> to vector<1x16x16xf32>
    %103 = vector.shape_cast %102 : vector<1x16x16xf32> to vector<16x16xf32>
    %104 = vector.extract_strided_slice %101 {offsets = [1, 0, 0], sizes = [1, 16, 16], strides = [1, 1, 1]} : vector<4x16x16xf32> to vector<1x16x16xf32>
    %105 = vector.shape_cast %104 : vector<1x16x16xf32> to vector<16x16xf32>
    %106 = arith.addf %103, %105 : vector<16x16xf32>
    %107 = vector.extract_strided_slice %101 {offsets = [2, 0, 0], sizes = [1, 16, 16], strides = [1, 1, 1]} : vector<4x16x16xf32> to vector<1x16x16xf32>
    %108 = vector.shape_cast %107 : vector<1x16x16xf32> to vector<16x16xf32>
    %109 = arith.addf %106, %108 : vector<16x16xf32>
    %110 = vector.extract_strided_slice %101 {offsets = [3, 0, 0], sizes = [1, 16, 16], strides = [1, 1, 1]} : vector<4x16x16xf32> to vector<1x16x16xf32>
    %111 = vector.shape_cast %110 : vector<1x16x16xf32> to vector<16x16xf32>
    %112 = arith.addf %109, %111 : vector<16x16xf32>
    %c1_32 = arith.constant 1 : index
    %c0_33 = arith.constant 0 : index
    %c0_34 = arith.constant 0 : index
    %c0_35 = arith.constant 0 : index
    %113 = vector.load %arg8[%c1_32, %c0_33, %c0_34, %c0_35] : memref<4x4x1x1xf32, #tpu.memory_space<vmem>>, vector<1x4x1x1xf32>
    %114 = vector.shape_cast %113 : vector<1x4x1x1xf32> to vector<4x1x1xf32>
    %115 = vector.broadcast %114 : vector<4x1x1xf32> to vector<4x16x16xf32>
    %116 = arith.mulf %97, %115 : vector<4x16x16xf32>
    %117 = vector.extract_strided_slice %116 {offsets = [0, 0, 0], sizes = [1, 16, 16], strides = [1, 1, 1]} : vector<4x16x16xf32> to vector<1x16x16xf32>
    %118 = vector.shape_cast %117 : vector<1x16x16xf32> to vector<16x16xf32>
    %119 = vector.extract_strided_slice %116 {offsets = [1, 0, 0], sizes = [1, 16, 16], strides = [1, 1, 1]} : vector<4x16x16xf32> to vector<1x16x16xf32>
    %120 = vector.shape_cast %119 : vector<1x16x16xf32> to vector<16x16xf32>
    %121 = arith.addf %118, %120 : vector<16x16xf32>
    %122 = vector.extract_strided_slice %116 {offsets = [2, 0, 0], sizes = [1, 16, 16], strides = [1, 1, 1]} : vector<4x16x16xf32> to vector<1x16x16xf32>
    %123 = vector.shape_cast %122 : vector<1x16x16xf32> to vector<16x16xf32>
    %124 = arith.addf %121, %123 : vector<16x16xf32>
    %125 = vector.extract_strided_slice %116 {offsets = [3, 0, 0], sizes = [1, 16, 16], strides = [1, 1, 1]} : vector<4x16x16xf32> to vector<1x16x16xf32>
    %126 = vector.shape_cast %125 : vector<1x16x16xf32> to vector<16x16xf32>
    %127 = arith.addf %124, %126 : vector<16x16xf32>
    %c2_36 = arith.constant 2 : index
    %c0_37 = arith.constant 0 : index
    %c0_38 = arith.constant 0 : index
    %c0_39 = arith.constant 0 : index
    %128 = vector.load %arg8[%c2_36, %c0_37, %c0_38, %c0_39] : memref<4x4x1x1xf32, #tpu.memory_space<vmem>>, vector<1x4x1x1xf32>
    %129 = vector.shape_cast %128 : vector<1x4x1x1xf32> to vector<4x1x1xf32>
    %130 = vector.broadcast %129 : vector<4x1x1xf32> to vector<4x16x16xf32>
    %131 = arith.mulf %97, %130 : vector<4x16x16xf32>
    %132 = vector.extract_strided_slice %131 {offsets = [0, 0, 0], sizes = [1, 16, 16], strides = [1, 1, 1]} : vector<4x16x16xf32> to vector<1x16x16xf32>
    %133 = vector.shape_cast %132 : vector<1x16x16xf32> to vector<16x16xf32>
    %134 = vector.extract_strided_slice %131 {offsets = [1, 0, 0], sizes = [1, 16, 16], strides = [1, 1, 1]} : vector<4x16x16xf32> to vector<1x16x16xf32>
    %135 = vector.shape_cast %134 : vector<1x16x16xf32> to vector<16x16xf32>
    %136 = arith.addf %133, %135 : vector<16x16xf32>
    %137 = vector.extract_strided_slice %131 {offsets = [2, 0, 0], sizes = [1, 16, 16], strides = [1, 1, 1]} : vector<4x16x16xf32> to vector<1x16x16xf32>
    %138 = vector.shape_cast %137 : vector<1x16x16xf32> to vector<16x16xf32>
    %139 = arith.addf %136, %138 : vector<16x16xf32>
    %140 = vector.extract_strided_slice %131 {offsets = [3, 0, 0], sizes = [1, 16, 16], strides = [1, 1, 1]} : vector<4x16x16xf32> to vector<1x16x16xf32>
    %141 = vector.shape_cast %140 : vector<1x16x16xf32> to vector<16x16xf32>
    %142 = arith.addf %139, %141 : vector<16x16xf32>
    %c3_40 = arith.constant 3 : index
    %c0_41 = arith.constant 0 : index
    %c0_42 = arith.constant 0 : index
    %c0_43 = arith.constant 0 : index
    %143 = vector.load %arg8[%c3_40, %c0_41, %c0_42, %c0_43] : memref<4x4x1x1xf32, #tpu.memory_space<vmem>>, vector<1x4x1x1xf32>
    %144 = vector.shape_cast %143 : vector<1x4x1x1xf32> to vector<4x1x1xf32>
    %145 = vector.broadcast %144 : vector<4x1x1xf32> to vector<4x16x16xf32>
    %146 = arith.mulf %97, %145 : vector<4x16x16xf32>
    %147 = vector.extract_strided_slice %146 {offsets = [0, 0, 0], sizes = [1, 16, 16], strides = [1, 1, 1]} : vector<4x16x16xf32> to vector<1x16x16xf32>
    %148 = vector.shape_cast %147 : vector<1x16x16xf32> to vector<16x16xf32>
    %149 = vector.extract_strided_slice %146 {offsets = [1, 0, 0], sizes = [1, 16, 16], strides = [1, 1, 1]} : vector<4x16x16xf32> to vector<1x16x16xf32>
    %150 = vector.shape_cast %149 : vector<1x16x16xf32> to vector<16x16xf32>
    %151 = arith.addf %148, %150 : vector<16x16xf32>
    %152 = vector.extract_strided_slice %146 {offsets = [2, 0, 0], sizes = [1, 16, 16], strides = [1, 1, 1]} : vector<4x16x16xf32> to vector<1x16x16xf32>
    %153 = vector.shape_cast %152 : vector<1x16x16xf32> to vector<16x16xf32>
    %154 = arith.addf %151, %153 : vector<16x16xf32>
    %155 = vector.extract_strided_slice %146 {offsets = [3, 0, 0], sizes = [1, 16, 16], strides = [1, 1, 1]} : vector<4x16x16xf32> to vector<1x16x16xf32>
    %156 = vector.shape_cast %155 : vector<1x16x16xf32> to vector<16x16xf32>
    %157 = arith.addf %154, %156 : vector<16x16xf32>
    %158 = vector.shape_cast %112 : vector<16x16xf32> to vector<1x16x16xf32>
    %159 = vector.shape_cast %127 : vector<16x16xf32> to vector<1x16x16xf32>
    %160 = vector.shape_cast %142 : vector<16x16xf32> to vector<1x16x16xf32>
    %161 = vector.shape_cast %157 : vector<16x16xf32> to vector<1x16x16xf32>
    %162 = tpu.concatenate %158, %159, %160, %161 in 0 : vector<1x16x16xf32>, vector<1x16x16xf32>, vector<1x16x16xf32>, vector<1x16x16xf32> -> vector<4x16x16xf32>
    %163 = arith.truncf %162 : vector<4x16x16xf32> to vector<4x16x16xbf16>
    "tpu.trace_start"() <{level = 10 : i32, message = "hqk,hkd->hqd"}> : () -> ()
    %cst_44 = arith.constant dense<0.000000e+00> : vector<4x16x32xf32>
    %164 = tpu.matmul %163, %21, %cst_44 {dimension_numbers = #tpu.dot_dimension_numbers<[2], [1], [1], [2], [0, 0, 0, 1, 1, 2], [0], [0]>} : vector<4x16x16xbf16>, vector<4x16x32xbf16>, vector<4x16x32xf32> -> vector<4x16x32xf32>
    "tpu.trace_stop"() : () -> ()
    %165 = vector.extract_strided_slice %164 {offsets = [0, 0, 0], sizes = [1, 16, 32], strides = [1, 1, 1]} : vector<4x16x32xf32> to vector<1x16x32xf32>
    %166 = vector.shape_cast %165 : vector<1x16x32xf32> to vector<16x32xf32>
    %167 = vector.extract_strided_slice %164 {offsets = [1, 0, 0], sizes = [1, 16, 32], strides = [1, 1, 1]} : vector<4x16x32xf32> to vector<1x16x32xf32>
    %168 = vector.shape_cast %167 : vector<1x16x32xf32> to vector<16x32xf32>
    %169 = vector.extract_strided_slice %164 {offsets = [2, 0, 0], sizes = [1, 16, 32], strides = [1, 1, 1]} : vector<4x16x32xf32> to vector<1x16x32xf32>
    %170 = vector.shape_cast %169 : vector<1x16x32xf32> to vector<16x32xf32>
    %171 = vector.extract_strided_slice %164 {offsets = [3, 0, 0], sizes = [1, 16, 32], strides = [1, 1, 1]} : vector<4x16x32xf32> to vector<1x16x32xf32>
    %172 = vector.shape_cast %171 : vector<1x16x32xf32> to vector<16x32xf32>
    %173 = tpu.concatenate %166, %168, %170, %172 in 1 : vector<16x32xf32>, vector<16x32xf32>, vector<16x32xf32>, vector<16x32xf32> -> vector<16x128xf32>
    %174 = arith.truncf %173 : vector<16x128xf32> to vector<16x128xbf16>
    %c0_45 = arith.constant 0 : index
    %c0_46 = arith.constant 0 : index
    %175 = vector.load %arg9[%c0_45, %c0_46] : memref<128x128xbf16, #tpu.memory_space<vmem>>, vector<128x128xbf16>
    %cst_47 = arith.constant dense<0.000000e+00> : vector<16x128xf32>
    %176 = tpu.matmul %174, %175, %cst_47 {dimension_numbers = #tpu.dot_dimension_numbers<[1], [0], [0], [1], [0, 0, 1, 1], [], []>} : vector<16x128xbf16>, vector<128x128xbf16>, vector<16x128xf32> -> vector<16x128xf32>
    %c0_48 = arith.constant 0 : index
    %c0_49 = arith.constant 0 : index
    %177 = vector.load %arg10[%c0_48, %c0_49] : memref<1x128xf32, #tpu.memory_space<vmem>>, vector<1x128xf32>
    %178 = vector.broadcast %177 : vector<1x128xf32> to vector<16x128xf32>
    %179 = arith.addf %176, %178 : vector<16x128xf32>
    %c0_50 = arith.constant 0 : index
    %c0_51 = arith.constant 0 : index
    %c0_52 = arith.constant 0 : index
    %180 = vector.load %arg11[%c0_50, %c0_51, %c0_52] : memref<1x16x128xf32, #tpu.memory_space<vmem>>, vector<1x16x128xf32>
    %181 = vector.shape_cast %180 : vector<1x16x128xf32> to vector<16x128xf32>
    %182 = vector.shape_cast %179 : vector<16x128xf32> to vector<1x16x128xf32>
    tpu.vector_store %arg11[%c0_50, %c0_51, %c0_52], %182 {strides = array<i32>} : memref<1x16x128xf32, #tpu.memory_space<vmem>>, vector<1x16x128xf32>,
    return
  }
  func.func @transform_0(%arg0: i32, %arg1: i32) -> (i32, i32, i32) {
    %c0_i32 = arith.constant 0 : i32
    %c0_i32_0 = arith.constant 0 : i32
    %c0_i32_1 = arith.constant 0 : i32
    return %arg0, %c0_i32, %c0_i32_0 : i32, i32, i32
  }
  func.func @transform_1(%arg0: i32, %arg1: i32) -> (i32, i32, i32) {
    %c0_i32 = arith.constant 0 : i32
    %c0_i32_0 = arith.constant 0 : i32
    return %arg0, %arg1, %c0_i32 : i32, i32, i32
  }
  func.func @transform_2(%arg0: i32, %arg1: i32) -> (i32, i32) {
    %c0_i32 = arith.constant 0 : i32
    %c0_i32_0 = arith.constant 0 : i32
    %c0_i32_1 = arith.constant 0 : i32
    return %c0_i32, %c0_i32_0 : i32, i32
  }
  func.func @transform_3(%arg0: i32, %arg1: i32) -> (i32, i32) {
    %c0_i32 = arith.constant 0 : i32
    %c0_i32_0 = arith.constant 0 : i32
    %c0_i32_1 = arith.constant 0 : i32
    return %c0_i32, %c0_i32_0 : i32, i32
  }
  func.func @transform_4(%arg0: i32, %arg1: i32) -> (i32, i32) {
    %c0_i32 = arith.constant 0 : i32
    %c0_i32_0 = arith.constant 0 : i32
    %c0_i32_1 = arith.constant 0 : i32
    return %c0_i32, %c0_i32_0 : i32, i32
  }
  func.func @transform_5(%arg0: i32, %arg1: i32) -> (i32, i32, i32, i32) {
    %c0_i32 = arith.constant 0 : i32
    %c0_i32_0 = arith.constant 0 : i32
    %c0_i32_1 = arith.constant 0 : i32
    %c0_i32_2 = arith.constant 0 : i32
    %c0_i32_3 = arith.constant 0 : i32
    return %c0_i32, %c0_i32_0, %c0_i32_1, %c0_i32_2 : i32, i32, i32, i32
  }
  func.func @transform_6(%arg0: i32, %arg1: i32) -> (i32, i32, i32, i32) {
    %c0_i32 = arith.constant 0 : i32
    %c0_i32_0 = arith.constant 0 : i32
    %c0_i32_1 = arith.constant 0 : i32
    %c0_i32_2 = arith.constant 0 : i32
    %c0_i32_3 = arith.constant 0 : i32
    return %c0_i32, %c0_i32_0, %c0_i32_1, %c0_i32_2 : i32, i32, i32, i32
  }
  func.func @transform_7(%arg0: i32, %arg1: i32) -> (i32, i32) {
    %c0_i32 = arith.constant 0 : i32
    %c0_i32_0 = arith.constant 0 : i32
    %c0_i32_1 = arith.constant 0 : i32
    return %c0_i32, %c0_i32_0 : i32, i32
  }
  func.func @transform_8(%arg0: i32, %arg1: i32) -> (i32, i32) {
    %c0_i32 = arith.constant 0 : i32
    %c0_i32_0 = arith.constant 0 : i32
    %c0_i32_1 = arith.constant 0 : i32
    return %c0_i32, %c0_i32_0 : i32, i32
  }
  func.func @transform_9(%arg0: i32, %arg1: i32) -> (i32, i32, i32) {
    %c0_i32 = arith.constant 0 : i32
    %c0_i32_0 = arith.constant 0 : i32
    return %arg0, %arg1, %c0_i32 : i32, i32, i32
  }
}

</mosaic_0001>

<llo_original>
// kernel: tpu_custom_call.1
$region0: #{tpu_custom_call.1}
  #allocation0 [shape = 'u32[]', space=smem, size = 0x4, offset = 0x4, fixed_abs, tag = 'smem constant byte address 0x4 - core index']
  #allocation1 [shape = 'u32[144,128]{1,0:T(1,128)}', space=vmem, size = 0x12000, scoped, tag = 'internal scratch']
  #allocation2 [shape = 'bf16[4,16,32]{2,1,0:T(16,128)(2,1)}', space=vmem, size = 0x4000, scoped, tag = 'scratch operand']
  #allocation3 [shape = 'bf16[4,16,32]{2,1,0:T(16,128)(2,1)}', space=vmem, size = 0x4000, scoped, tag = 'scratch operand']
  %s0 = inlined_call_operand.hbm [shape: f32[2,16,128], index: 0, kind: input, shape index: {}]
  %s1 = inlined_call_operand.hbm [shape: f32[2,16,128], index: 1, kind: input, shape index: {}]
  %s2 = inlined_call_operand.hbm [shape: bf16[128,128], index: 2, kind: input, shape index: {}]
  %s3 = inlined_call_operand.hbm [shape: bf16[128,128], index: 3, kind: input, shape index: {}]
  %s4 = inlined_call_operand.hbm [shape: bf16[128,128], index: 4, kind: input, shape index: {}]
  %s5 = inlined_call_operand.vmem [shape: f32[4,4,1,1], index: 5, kind: input, shape index: {}]
  %s6 = inlined_call_operand.vmem [shape: f32[4,4,1,1], index: 6, kind: input, shape index: {}]
  %s7 = inlined_call_operand.vmem [shape: bf16[128,128], index: 7, kind: input, shape index: {}]
  %s8 = inlined_call_operand.vmem [shape: f32[1,128], index: 8, kind: input, shape index: {}]
  %s9 = inlined_call_operand.hbm [shape: f32[2,16,128], index: 9, kind: output, shape index: {}]
  %s10 = sld [smem:[#allocation0]]
  $region93: #{tpu_custom_call.1} parent=0
    _
  %s12 = ssub.s32 1, %s10
  %s13 = scalar_select 0, %s12, %s10
  $region1: #{tpu_custom_call.1} parent=0
    #allocation4 [shape = 'u8[16384]{0}', space=vmem, size = 0x4000, scoped, tag = 'input window, operand 0']
    #allocation5 [shape = 's32[2]{0}', space=sflag, size = 0x8, scoped, tag = 'scoped memory for tpu_custom_call.1']
    #allocation6 [shape = 's32[2]{0}', space=sflag, size = 0x8, scoped, tag = 'scoped memory for tpu_custom_call.1']
    #allocation7 [shape = 'u8[16384]{0}', space=vmem, size = 0x4000, scoped, tag = 'input window, operand 1']
    #allocation8 [shape = 's32[2]{0}', space=sflag, size = 0x8, scoped, tag = 'scoped memory for tpu_custom_call.1']
    #allocation9 [shape = 'u8[32768]{0}', space=vmem, size = 0x8000, scoped, tag = 'input window, operand 2, single buffered']
    #allocation10 [shape = 'u8[32768]{0}', space=vmem, size = 0x8000, scoped, tag = 'input window, operand 3, single buffered']
    #allocation11 [shape = 's32[1]{0}', space=sflag, size = 0x4, scoped, tag = 'scoped memory for tpu_custom_call.1']
    #allocation12 [shape = 'u8[32768]{0}', space=vmem, size = 0x8000, scoped, tag = 'input window, operand 4, single buffered']
    #allocation13 [shape = 'u8[16384]{0}', space=vmem, size = 0x4000, scoped, tag = 'output window, operand 0']
    %14 = vsyncpa [#allocation5], 0
    %s15 = scalar_lea.sflag [#allocation5], 1
    %16 = vsyncpa %s15, 0
    %17 = vsyncpa [#allocation8], 0
    %s18 = scalar_lea.sflag [#allocation8], 1
    %19 = vsyncpa %s18, 0
    %20 = vsyncpa [#allocation11], 0
    %21 = vsyncpa [#allocation6], 0
    %s22 = scalar_lea.sflag [#allocation6], 1
    %23 = vsyncpa %s22, 0
    loop: start=0, step=1, limit=4
    $region2: #{tpu_custom_call.1} parent=1 // loop_pre_header
      _
    $region3: #{tpu_custom_call.1} parent=1 // loop_header
      %s25 = sphi 0, %s29
      %p26 = scmp.ge.s32.totalorder %s25, 4
      %s32 = sphi 0, %s44
      %s33 = sphi 0, %s40
      %s34 = sphi 0, %s32
      %s35 = sphi 0, %s33
      %s36 = sphi 0, %s34
      %s37 = sphi 0, %s35
      %s47 = sphi 0, %s49
      %s50 = sphi 0, %s47
      %s51 = sphi 0, %s50
      %s67 = sphi 0, %s51
      %s75 = sphi 0, %s77
      %s78 = sphi 0, %s75
      %s79 = sphi 0, %s78
      %s95 = sphi 0, %s79
      %s99 = sphi 0, %s99
      %s101 = sphi 0, %s99
      %s102 = sphi 0, %s101
      %s116 = sphi 0, %s102
      %s120 = sphi 0, %s120
      %s122 = sphi 0, %s120
      %s123 = sphi 0, %s122
      %s137 = sphi 0, %s123
      %s141 = sphi 0, %s141
      %s143 = sphi 0, %s141
      %s144 = sphi 0, %s143
      %s158 = sphi 0, %s144
      %s162 = sphi 0, %s162
      %s164 = sphi 0, %s162
      %s165 = sphi 0, %s164
      %s179 = sphi 0, %s165
      %s183 = sphi 0, %s183
      %s185 = sphi 0, %s183
      %s186 = sphi 0, %s185
      %s200 = sphi 0, %s186
      %s204 = sphi 0, %s204
      %s206 = sphi 0, %s204
      %s207 = sphi 0, %s206
      %s221 = sphi 0, %s207
      %s225 = sphi 0, %s225
      %s227 = sphi 0, %s225
      %s228 = sphi 0, %s227
      %s242 = sphi 0, %s228
      %s250 = sphi 0, %s252
      %s253 = sphi 0, %s250
      %s254 = sphi 0, %s253
      %s270 = sphi 0, %s254
    $region4: #{tpu_custom_call.1} parent=1 // loop_header_branch
      %28 = sbr.rel (%p26) target = $region8
    $region5: #{tpu_custom_call.1} parent=1 // loop_body
      %s30 = ssub.s32 %s25, 1
      %s31 = ssub.s32 %s25, 2
      %s38 = sadd.s32 1, %s33
      %p39 = scmp.ge.s32.totalorder %s38, 1
      %s40 = scalar_select %p39, 0, %s38
      %s41 = sadd.s32 1, %s32
      %s42 = scalar_select %p39, %s41, %s32
      %p43 = scmp.ge.s32.totalorder %s42, 2
      %s44 = scalar_select %p43, 0, %s42
      %s45 = ssub.s32 %s32, %s44
      %p46 = scmp.eq.s32.totalorder %s45, 0
      %s48 = sadd.s32 %s47, 1
      %s49 = scalar_select %p46, %s47, %s48
      %p52 = pneg %p46
      %p53 = scmp.eq.s32.totalorder %s25, 1
      %p54 = por %p52, %p53
      %p55 = scmp.ne.s32.totalorder %s47, %s50
      %p56 = scmp.eq.s32.totalorder %s25, 0
      %p57 = por %p55, %p56
      %p58 = scmp.ne.s32.totalorder %s47, %s50
      %p59 = scmp.eq.s32.totalorder %s30, 1
      %p60 = por %p58, %p59
      %p61 = scmp.ne.s32.totalorder %s50, %s51
      %p62 = scmp.eq.s32.totalorder %s30, 0
      %p63 = por %p61, %p62
      %p64 = scmp.ne.s32.totalorder %s50, %s51
      %p65 = scmp.eq.s32.totalorder %s31, 1
      %p66 = por %p64, %p65
      %p68 = scmp.ne.s32.totalorder %s51, %s67
      %p69 = scmp.eq.s32.totalorder %s31, 0
      %p70 = por %p68, %p69
      %s71 = ssub.s32 %s32, %s44
      %s72 = ssub.s32 %s33, %s40
      %s73 = sor.u32 %s71, %s72
      %p74 = scmp.eq.s32.totalorder %s73, 0
      %s76 = sadd.s32 %s75, 1
      %s77 = scalar_select %p74, %s75, %s76
      %p80 = pneg %p74
      %p81 = scmp.eq.s32.totalorder %s25, 1
      %p82 = por %p80, %p81
      %p83 = scmp.ne.s32.totalorder %s75, %s78
      %p84 = scmp.eq.s32.totalorder %s25, 0
      %p85 = por %p83, %p84
      %p86 = scmp.ne.s32.totalorder %s75, %s78
      %p87 = scmp.eq.s32.totalorder %s30, 1
      %p88 = por %p86, %p87
      %p89 = scmp.ne.s32.totalorder %s78, %s79
      %p90 = scmp.eq.s32.totalorder %s30, 0
      %p91 = por %p89, %p90
      %p92 = scmp.ne.s32.totalorder %s78, %s79
      %p93 = scmp.eq.s32.totalorder %s31, 1
      %p94 = por %p92, %p93
      %p96 = scmp.ne.s32.totalorder %s79, %s95
      %p97 = scmp.eq.s32.totalorder %s31, 0
      %p98 = por %p96, %p97
      %s100 = sadd.s32 %s99, 1
      %p103 = scmp.eq.s32.totalorder %s25, 1
      %p104 = scmp.ne.s32.totalorder %s99, %s101
      %p105 = scmp.eq.s32.totalorder %s25, 0
      %p106 = por %p104, %p105
      %p107 = scmp.ne.s32.totalorder %s99, %s101
      %p108 = scmp.eq.s32.totalorder %s30, 1
      %p109 = por %p107, %p108
      %p110 = scmp.ne.s32.totalorder %s101, %s102
      %p111 = scmp.eq.s32.totalorder %s30, 0
      %p112 = por %p110, %p111
      %p113 = scmp.ne.s32.totalorder %s101, %s102
      %p114 = scmp.eq.s32.totalorder %s31, 1
      %p115 = por %p113, %p114
      %p117 = scmp.ne.s32.totalorder %s102, %s116
      %p118 = scmp.eq.s32.totalorder %s31, 0
      %p119 = por %p117, %p118
      %s121 = sadd.s32 %s120, 1
      %p124 = scmp.eq.s32.totalorder %s25, 1
      %p125 = scmp.ne.s32.totalorder %s120, %s122
      %p126 = scmp.eq.s32.totalorder %s25, 0
      %p127 = por %p125, %p126
      %p128 = scmp.ne.s32.totalorder %s120, %s122
      %p129 = scmp.eq.s32.totalorder %s30, 1
      %p130 = por %p128, %p129
      %p131 = scmp.ne.s32.totalorder %s122, %s123
      %p132 = scmp.eq.s32.totalorder %s30, 0
      %p133 = por %p131, %p132
      %p134 = scmp.ne.s32.totalorder %s122, %s123
      %p135 = scmp.eq.s32.totalorder %s31, 1
      %p136 = por %p134, %p135
      %p138 = scmp.ne.s32.totalorder %s123, %s137
      %p139 = scmp.eq.s32.totalorder %s31, 0
      %p140 = por %p138, %p139
      %s142 = sadd.s32 %s141, 1
      %p145 = scmp.eq.s32.totalorder %s25, 1
      %p146 = scmp.ne.s32.totalorder %s141, %s143
      %p147 = scmp.eq.s32.totalorder %s25, 0
      %p148 = por %p146, %p147
      %p149 = scmp.ne.s32.totalorder %s141, %s143
      %p150 = scmp.eq.s32.totalorder %s30, 1
      %p151 = por %p149, %p150
      %p152 = scmp.ne.s32.totalorder %s143, %s144
      %p153 = scmp.eq.s32.totalorder %s30, 0
      %p154 = por %p152, %p153
      %p155 = scmp.ne.s32.totalorder %s143, %s144
      %p156 = scmp.eq.s32.totalorder %s31, 1
      %p157 = por %p155, %p156
      %p159 = scmp.ne.s32.totalorder %s144, %s158
      %p160 = scmp.eq.s32.totalorder %s31, 0
      %p161 = por %p159, %p160
      %s163 = sadd.s32 %s162, 1
      %p166 = scmp.eq.s32.totalorder %s25, 1
      %p167 = scmp.ne.s32.totalorder %s162, %s164
      %p168 = scmp.eq.s32.totalorder %s25, 0
      %p169 = por %p167, %p168
      %p170 = scmp.ne.s32.totalorder %s162, %s164
      %p171 = scmp.eq.s32.totalorder %s30, 1
      %p172 = por %p170, %p171
      %p173 = scmp.ne.s32.totalorder %s164, %s165
      %p174 = scmp.eq.s32.totalorder %s30, 0
      %p175 = por %p173, %p174
      %p176 = scmp.ne.s32.totalorder %s164, %s165
      %p177 = scmp.eq.s32.totalorder %s31, 1
      %p178 = por %p176, %p177
      %p180 = scmp.ne.s32.totalorder %s165, %s179
      %p181 = scmp.eq.s32.totalorder %s31, 0
      %p182 = por %p180, %p181
      %s184 = sadd.s32 %s183, 1
      %p187 = scmp.eq.s32.totalorder %s25, 1
      %p188 = scmp.ne.s32.totalorder %s183, %s185
      %p189 = scmp.eq.s32.totalorder %s25, 0
      %p190 = por %p188, %p189
      %p191 = scmp.ne.s32.totalorder %s183, %s185
      %p192 = scmp.eq.s32.totalorder %s30, 1
      %p193 = por %p191, %p192
      %p194 = scmp.ne.s32.totalorder %s185, %s186
      %p195 = scmp.eq.s32.totalorder %s30, 0
      %p196 = por %p194, %p195
      %p197 = scmp.ne.s32.totalorder %s185, %s186
      %p198 = scmp.eq.s32.totalorder %s31, 1
      %p199 = por %p197, %p198
      %p201 = scmp.ne.s32.totalorder %s186, %s200
      %p202 = scmp.eq.s32.totalorder %s31, 0
      %p203 = por %p201, %p202
      %s205 = sadd.s32 %s204, 1
      %p208 = scmp.eq.s32.totalorder %s25, 1
      %p209 = scmp.ne.s32.totalorder %s204, %s206
      %p210 = scmp.eq.s32.totalorder %s25, 0
      %p211 = por %p209, %p210
      %p212 = scmp.ne.s32.totalorder %s204, %s206
      %p213 = scmp.eq.s32.totalorder %s30, 1
      %p214 = por %p212, %p213
      %p215 = scmp.ne.s32.totalorder %s206, %s207
      %p216 = scmp.eq.s32.totalorder %s30, 0
      %p217 = por %p215, %p216
      %p218 = scmp.ne.s32.totalorder %s206, %s207
      %p219 = scmp.eq.s32.totalorder %s31, 1
      %p220 = por %p218, %p219
      %p222 = scmp.ne.s32.totalorder %s207, %s221
      %p223 = scmp.eq.s32.totalorder %s31, 0
      %p224 = por %p222, %p223
      %s226 = sadd.s32 %s225, 1
      %p229 = scmp.eq.s32.totalorder %s25, 1
      %p230 = scmp.ne.s32.totalorder %s225, %s227
      %p231 = scmp.eq.s32.totalorder %s25, 0
      %p232 = por %p230, %p231
      %p233 = scmp.ne.s32.totalorder %s225, %s227
      %p234 = scmp.eq.s32.totalorder %s30, 1
      %p235 = por %p233, %p234
      %p236 = scmp.ne.s32.totalorder %s227, %s228
      %p237 = scmp.eq.s32.totalorder %s30, 0
      %p238 = por %p236, %p237
      %p239 = scmp.ne.s32.totalorder %s227, %s228
      %p240 = scmp.eq.s32.totalorder %s31, 1
      %p241 = por %p239, %p240
      %p243 = scmp.ne.s32.totalorder %s228, %s242
      %p244 = scmp.eq.s32.totalorder %s31, 0
      %p245 = por %p243, %p244
      %s246 = ssub.s32 %s32, %s44
      %s247 = ssub.s32 %s33, %s40
      %s248 = sor.u32 %s246, %s247
      %p249 = scmp.eq.s32.totalorder %s248, 0
      %s251 = sadd.s32 %s250, 1
      %s252 = scalar_select %p249, %s250, %s251
      %p255 = pneg %p249
      %p256 = scmp.eq.s32.totalorder %s25, 1
      %p257 = por %p255, %p256
      %p258 = scmp.ne.s32.totalorder %s250, %s253
      %p259 = scmp.eq.s32.totalorder %s25, 0
      %p260 = por %p258, %p259
      %p261 = scmp.ne.s32.totalorder %s250, %s253
      %p262 = scmp.eq.s32.totalorder %s30, 1
      %p263 = por %p261, %p262
      %p264 = scmp.ne.s32.totalorder %s253, %s254
      %p265 = scmp.eq.s32.totalorder %s30, 0
      %p266 = por %p264, %p265
      %p267 = scmp.ne.s32.totalorder %s253, %s254
      %p268 = scmp.eq.s32.totalorder %s31, 1
      %p269 = por %p267, %p268
      %p271 = scmp.ne.s32.totalorder %s254, %s270
      %p272 = scmp.eq.s32.totalorder %s31, 0
      %p273 = por %p271, %p272
      %p274 = scmp.le.s32.totalorder 1, %s25
      %p275 = scmp.lt.s32.totalorder %s25, 3
      %p276 = pnand %p274, %p275
      %p277 = pneg %p276
      // Predicated region
      $region9: #{tpu_custom_call.1} parent=5 // pred_check
        _
      $region10: #{tpu_custom_call.1} parent=5 // pred_check_branch
        %279 = sbr.rel (%p276) target = $region12
      $region11: #{tpu_custom_call.1} parent=5 // pred_region
        %s280 = ssub.s32 %s25, 1
        // Predicated region
        $region13: #{tpu_custom_call.1} parent=11 // pred_check
          %p281 = pneg %p112
        $region14: #{tpu_custom_call.1} parent=11 // pred_check_branch
          %283 = sbr.rel (%p281) target = $region16
        $region15: #{tpu_custom_call.1} parent=11 // pred_region
          %s285 = ssub.s32 1024, 1024
          %286 = vsyncadd [#allocation8], %s285
          %s287 = sshll.u32 [#allocation9], 4
          %s288 = int_to_ptr.vmem [resolvable:$true] %s287
          %293 = dma.hbm_to_vmem [thread:$0]  %s2, 1024, %s288, [#allocation8], 64, 64, 4
        $region16: #{tpu_custom_call.1} parent=11 // pred_fallthru
          _
        // Predicated region
        $region17: #{tpu_custom_call.1} parent=11 // pred_check
          %p294 = pneg %p133
        $region18: #{tpu_custom_call.1} parent=11 // pred_check_branch
          %296 = sbr.rel (%p294) target = $region20
        $region19: #{tpu_custom_call.1} parent=11 // pred_region
          %s298 = ssub.s32 1024, 1024
          %299 = vsyncadd [#allocation11], %s298
          %s300 = sshll.u32 [#allocation10], 4
          %s301 = int_to_ptr.vmem [resolvable:$true] %s300
          %306 = dma.hbm_to_vmem [thread:$0]  %s3, 1024, %s301, [#allocation11], 64, 64, 4
        $region20: #{tpu_custom_call.1} parent=11 // pred_fallthru
          _
        // Predicated region
        $region21: #{tpu_custom_call.1} parent=11 // pred_check
          %p307 = pneg %p154
        $region22: #{tpu_custom_call.1} parent=11 // pred_check_branch
          %309 = sbr.rel (%p307) target = $region24
        $region23: #{tpu_custom_call.1} parent=11 // pred_region
          %s311 = ssub.s32 1024, 1024
          %312 = vsyncadd [#allocation11], %s311
          %s313 = sshll.u32 [#allocation12], 4
          %s314 = int_to_ptr.vmem [resolvable:$true] %s313
          %319 = dma.hbm_to_vmem [thread:$0]  %s4, 1024, %s314, [#allocation11], 64, 64, 4
        $region24: #{tpu_custom_call.1} parent=11 // pred_fallthru
          _
        // Predicated region
        $region25: #{tpu_custom_call.1} parent=11 // pred_check
          %p320 = pneg %p175
        $region26: #{tpu_custom_call.1} parent=11 // pred_check_branch
          %322 = sbr.rel (%p320) target = $region28
        $region27: #{tpu_custom_call.1} parent=11 // pred_region
          _
        $region28: #{tpu_custom_call.1} parent=11 // pred_fallthru
          _
        // Predicated region
        $region29: #{tpu_custom_call.1} parent=11 // pred_check
          %p323 = pneg %p196
        $region30: #{tpu_custom_call.1} parent=11 // pred_check_branch
          %325 = sbr.rel (%p323) target = $region32
        $region31: #{tpu_custom_call.1} parent=11 // pred_region
          _
        $region32: #{tpu_custom_call.1} parent=11 // pred_fallthru
          _
        // Predicated region
        $region33: #{tpu_custom_call.1} parent=11 // pred_check
          %p326 = pneg %p217
        $region34: #{tpu_custom_call.1} parent=11 // pred_check_branch
          %328 = sbr.rel (%p326) target = $region36
        $region35: #{tpu_custom_call.1} parent=11 // pred_region
          _
        $region36: #{tpu_custom_call.1} parent=11 // pred_fallthru
          _
        // Predicated region
        $region37: #{tpu_custom_call.1} parent=11 // pred_check
          %p329 = pneg %p238
        $region38: #{tpu_custom_call.1} parent=11 // pred_check_branch
          %331 = sbr.rel (%p329) target = $region40
        $region39: #{tpu_custom_call.1} parent=11 // pred_region
          _
        $region40: #{tpu_custom_call.1} parent=11 // pred_fallthru
          _
      $region12: #{tpu_custom_call.1} parent=5 // pred_fallthru
        _
      %p332 = scmp.lt.s32.totalorder %s25, 2
      // Predicated region
      $region41: #{tpu_custom_call.1} parent=5 // pred_check
        %p333 = pneg %p332
      $region42: #{tpu_custom_call.1} parent=5 // pred_check_branch
        %335 = sbr.rel (%p333) target = $region44
      $region43: #{tpu_custom_call.1} parent=5 // pred_region
        // Predicated region
        $region45: #{tpu_custom_call.1} parent=43 // pred_check
          %p336 = pneg %p57
        $region46: #{tpu_custom_call.1} parent=43 // pred_check_branch
          %338 = sbr.rel (%p336) target = $region48
        $region47: #{tpu_custom_call.1} parent=43 // pred_region
          %s339 = sand.u32 %s47, 1
          %s340 = scalar_lea.sflag [#allocation5], %s339
          %s341 = sand.u32 %s47, 1
          %s342 = smul.addr %s341, 16
          %s343 = scalar_lea.vmem [#allocation4], %s342
          %s345 = ssub.s32 256, 256
          %346 = vsyncadd %s340, %s345
          %s347 = smul.addr %s32, 2
          %s348 = smul.addr %s347, 128
          %s349 = scalar_lea.hbm %s0, %s348
          %s350 = sshll.u32 %s343, 4
          %s351 = int_to_ptr.vmem [resolvable:$true] %s350
          %356 = dma.hbm_to_vmem [thread:$0]  %s349, 256, %s351, %s340, 128, 128, 8
        $region48: #{tpu_custom_call.1} parent=43 // pred_fallthru
          _
        // Predicated region
        $region49: #{tpu_custom_call.1} parent=43 // pred_check
          %p357 = pneg %p85
        $region50: #{tpu_custom_call.1} parent=43 // pred_check_branch
          %359 = sbr.rel (%p357) target = $region52
        $region51: #{tpu_custom_call.1} parent=43 // pred_region
          %s360 = sand.u32 %s25, 1
          %s361 = scalar_lea.sflag [#allocation8], %s360
          %s362 = sand.u32 %s75, 1
          %s363 = smul.addr %s362, 16
          %s364 = scalar_lea.vmem [#allocation7], %s363
          %s365 = smul.u32 2, %s33
          %s367 = ssub.s32 256, 256
          %368 = vsyncadd %s361, %s367
          %s369 = smul.addr %s32, 2
          %s370 = sadd.s32 %s365, %s369
          %s371 = smul.addr %s370, 128
          %s372 = scalar_lea.hbm %s1, %s371
          %s373 = sshll.u32 %s364, 4
          %s374 = int_to_ptr.vmem [resolvable:$true] %s373
          %379 = dma.hbm_to_vmem [thread:$0]  %s372, 256, %s374, %s361, 128, 128, 8
        $region52: #{tpu_custom_call.1} parent=43 // pred_fallthru
          _
      $region44: #{tpu_custom_call.1} parent=5 // pred_fallthru
        _
      %p380 = scmp.le.s32.totalorder 1, %s25
      %p381 = scmp.lt.s32.totalorder %s25, 3
      %p382 = pnand %p380, %p381
      %p383 = pneg %p382
      // Predicated region
      $region53: #{tpu_custom_call.1} parent=5 // pred_check
        _
      $region54: #{tpu_custom_call.1} parent=5 // pred_check_branch
        %385 = sbr.rel (%p382) target = $region56
      $region55: #{tpu_custom_call.1} parent=5 // pred_region
        %s386 = ssub.s32 %s25, 1
        %s387 = sand.u32 %s50, 1
        %s388 = scalar_lea.sflag [#allocation5], %s387
        %s389 = sand.u32 %s50, 1
        %s390 = smul.addr %s389, 16
        %s391 = scalar_lea.vmem [#allocation4], %s390
        // Predicated region
        $region57: #{tpu_custom_call.1} parent=55 // pred_check
          %p392 = pneg %p63
        $region58: #{tpu_custom_call.1} parent=55 // pred_check_branch
          %394 = sbr.rel (%p392) target = $region60
        $region59: #{tpu_custom_call.1} parent=55 // pred_region
          %395 = dma.done %s388, 256
        $region60: #{tpu_custom_call.1} parent=55 // pred_fallthru
          _
        %s396 = sand.u32 %s30, 1
        %s397 = scalar_lea.sflag [#allocation8], %s396
        %s398 = sand.u32 %s78, 1
        %s399 = smul.addr %s398, 16
        %s400 = scalar_lea.vmem [#allocation7], %s399
        // Predicated region
        $region61: #{tpu_custom_call.1} parent=55 // pred_check
          %p401 = pneg %p91
        $region62: #{tpu_custom_call.1} parent=55 // pred_check_branch
          %403 = sbr.rel (%p401) target = $region64
        $region63: #{tpu_custom_call.1} parent=55 // pred_region
          %404 = dma.done %s397, 256
        $region64: #{tpu_custom_call.1} parent=55 // pred_fallthru
          _
        // Predicated region
        $region65: #{tpu_custom_call.1} parent=55 // pred_check
          %p405 = pneg %p112
        $region66: #{tpu_custom_call.1} parent=55 // pred_check_branch
          %407 = sbr.rel (%p405) target = $region68
        $region67: #{tpu_custom_call.1} parent=55 // pred_region
          %408 = dma.done [#allocation8], 1024
        $region68: #{tpu_custom_call.1} parent=55 // pred_fallthru
          _
        // Predicated region
        $region69: #{tpu_custom_call.1} parent=55 // pred_check
          %p409 = pneg %p133
        $region70: #{tpu_custom_call.1} parent=55 // pred_check_branch
          %411 = sbr.rel (%p409) target = $region72
        $region71: #{tpu_custom_call.1} parent=55 // pred_region
          %412 = dma.done [#allocation11], 1024
        $region72: #{tpu_custom_call.1} parent=55 // pred_fallthru
          _
        // Predicated region
        $region73: #{tpu_custom_call.1} parent=55 // pred_check
          %p413 = pneg %p154
        $region74: #{tpu_custom_call.1} parent=55 // pred_check_branch
          %415 = sbr.rel (%p413) target = $region76
        $region75: #{tpu_custom_call.1} parent=55 // pred_region
          %416 = dma.done [#allocation11], 1024
        $region76: #{tpu_custom_call.1} parent=55 // pred_fallthru
          _
        %s417 = sand.u32 %s50, 1
        %s418 = scalar_lea.sflag [#allocation5], %s417
        %s419 = sand.u32 %s50, 1
        %s420 = smul.addr %s419, 16
        %s421 = scalar_lea.vmem [#allocation4], %s420
        %p422 = pneg %p63
        %p423 = pneg %p60
        %s424 = sand.u32 %s30, 1
        %s425 = scalar_lea.sflag [#allocation8], %s424
        %s426 = sand.u32 %s78, 1
        %s427 = smul.addr %s426, 16
        %s428 = scalar_lea.vmem [#allocation7], %s427
        %p429 = pneg %p91
        %p430 = pneg %p88
        %p431 = pneg %p112
        %p432 = pneg %p109
        %p433 = pneg %p133
        %p434 = pneg %p130
        %p435 = pneg %p154
        %p436 = pneg %p151
        %p437 = pneg %p175
        %p438 = pneg %p172
        %p439 = pneg %p196
        %p440 = pneg %p193
        %p441 = pneg %p217
        %p442 = pneg %p214
        %p443 = pneg %p238
        %p444 = pneg %p235
        %p445 = pneg %p266
        %p446 = pneg %p263
        %s447 = sand.u32 %s253, 1
        %s448 = scalar_lea.sflag [#allocation6], %s447
        %s449 = sand.u32 %s253, 1
        %s450 = smul.addr %s449, 16
        %s451 = scalar_lea.vmem [#allocation13], %s450
        %s452 = smul.u32 2, %s35
        %s453 = smul.u32 2, %s35
        %p455 = scmp.eq.s32.totalorder %s35, 0
        // Predicated region
        $region77: #{tpu_custom_call.1} parent=55 // pred_check
          %p456 = pneg %p455
        $region78: #{tpu_custom_call.1} parent=55 // pred_check_branch
          %458 = sbr.rel (%p456) target = $region80
        $region79: #{tpu_custom_call.1} parent=55 // pred_region
          %v459 = vld [vmem:[%s391] sm:$0xff]
          %v460 = vld [vmem:[%s391 + $0x8] sm:$0xff]
          %v461 = vpack.c.bf16 %v460, %v459
          %v462 = vld [vmem:[#allocation10] sm:$0xf]
          %v463 = vld [vmem:[#allocation10 + $0x4] sm:$0xf]
          %v464 = vld [vmem:[#allocation10 + $0x8] sm:$0xf]
          %v465 = vld [vmem:[#allocation10 + $0xc] sm:$0xf]
          %v466 = vld [vmem:[#allocation10 + $0x10] sm:$0xf]
          %v467 = vld [vmem:[#allocation10 + $0x14] sm:$0xf]
          %v468 = vld [vmem:[#allocation10 + $0x18] sm:$0xf]
          %v469 = vld [vmem:[#allocation10 + $0x1c] sm:$0xf]
          %v470 = vld [vmem:[#allocation10 + $0x20] sm:$0xf]
          %v471 = vld [vmem:[#allocation10 + $0x24] sm:$0xf]
          %v472 = vld [vmem:[#allocation10 + $0x28] sm:$0xf]
          %v473 = vld [vmem:[#allocation10 + $0x2c] sm:$0xf]
          %v474 = vld [vmem:[#allocation10 + $0x30] sm:$0xf]
          %v475 = vld [vmem:[#allocation10 + $0x34] sm:$0xf]
          %v476 = vld [vmem:[#allocation10 + $0x38] sm:$0xf]
          %v477 = vld [vmem:[#allocation10 + $0x3c] sm:$0xf]
          %v494 = vunpack.c.l.b16 %v462
          %v495 = vunpack.c.l.b16 %v463
          %v496 = vunpack.c.l.b16 %v464
          %v497 = vunpack.c.l.b16 %v465
          %v498 = vunpack.c.l.b16 %v466
          %v499 = vunpack.c.l.b16 %v467
          %v500 = vunpack.c.l.b16 %v468
          %v501 = vunpack.c.l.b16 %v469
          %v502 = vunpack.c.l.b16 %v470
          %v503 = vunpack.c.l.b16 %v471
          %v504 = vunpack.c.l.b16 %v472
          %v505 = vunpack.c.l.b16 %v473
          %v506 = vunpack.c.l.b16 %v474
          %v507 = vunpack.c.l.b16 %v475
          %v508 = vunpack.c.l.b16 %v476
          %v509 = vunpack.c.l.b16 %v477
          %v510 = vpack.c.b16 %v495, %v494
          %v511 = vpack.c.b16 %v497, %v496
          %v512 = vpack.c.b16 %v499, %v498
          %v513 = vpack.c.b16 %v501, %v500
          %v514 = vpack.c.b16 %v503, %v502
          %v515 = vpack.c.b16 %v505, %v504
          %v516 = vpack.c.b16 %v507, %v506
          %v517 = vpack.c.b16 %v509, %v508
          %526 = vmatprep.subr.bf16.mxu0 0
          %527 = vmatpush1.bf16.msra.mxu0 %v510
          %528 = vmatprep.subr.bf16.mxu0 0
          %529 = vmatpush1.bf16.msra.mxu0 %v511
          %530 = vmatprep.subr.bf16.mxu0 0
          %531 = vmatpush1.bf16.msra.mxu0 %v512
          %532 = vmatprep.subr.bf16.mxu0 0
          %533 = vmatpush1.bf16.msra.mxu0 %v513
          %534 = vmatprep.subr.bf16.mxu0 0
          %535 = vmatpush1.bf16.msra.mxu0 %v514
          %536 = vmatprep.subr.bf16.mxu0 0
          %537 = vmatpush1.bf16.msra.mxu0 %v515
          %538 = vmatprep.subr.bf16.mxu0 0
          %539 = vmatpush1.bf16.msra.mxu0 %v516
          %540 = vmatprep.subr.bf16.mxu0 0
          %541 = vmatpush1.bf16.msra.mxu0 %v517
          %542 = vmatprep.subr.bf16.mxu0 0
          %543 = vmatpush1.bf16.msra.mxu0 0
          %544 = vmatprep.subr.bf16.mxu0 0
          %545 = vmatpush1.bf16.msra.mxu0 0
          %546 = vmatprep.subr.bf16.mxu0 0
          %547 = vmatpush1.bf16.msra.mxu0 0
          %548 = vmatprep.subr.bf16.mxu0 0
          %549 = vmatpush1.bf16.msra.mxu0 0
          %550 = vmatprep.subr.bf16.mxu0 0
          %551 = vmatpush1.bf16.msra.mxu0 0
          %552 = vmatprep.subr.bf16.mxu0 0
          %553 = vmatpush1.bf16.msra.mxu0 0
          %554 = vmatprep.subr.bf16.mxu0 0
          %555 = vmatpush1.bf16.msra.mxu0 0
          %556 = vmatprep.subr.bf16.mxu0 0
          %557 = vmatpush1.bf16.msra.mxu0 0
          %558 = vmatprep.mubr.bf16.mxu0 0
          %559 = vmatmul.mubr.bf16.gmra.mrb[0].mxu0 %v461
          %v560 = vpop.f32.mrb[0].mxu0
          %v561 = vadd.f32 0.0, %v560
          %v562 = vpop.f32.mrb[0].mxu0
          %v563 = vpop.f32.mrb[0].mxu0
          %v564 = vadd.f32 0.0, %v563
          %v565 = vpop.f32.mrb[0].mxu0
          %566 = vdwg.mxu0
          %v567 = vld [vmem:[#allocation12] sm:$0xf]
          %v568 = vld [vmem:[#allocation12 + $0x4] sm:$0xf]
          %v569 = vld [vmem:[#allocation12 + $0x8] sm:$0xf]
          %v570 = vld [vmem:[#allocation12 + $0xc] sm:$0xf]
          %v571 = vld [vmem:[#allocation12 + $0x10] sm:$0xf]
          %v572 = vld [vmem:[#allocation12 + $0x14] sm:$0xf]
          %v573 = vld [vmem:[#allocation12 + $0x18] sm:$0xf]
          %v574 = vld [vmem:[#allocation12 + $0x1c] sm:$0xf]
          %v575 = vld [vmem:[#allocation12 + $0x20] sm:$0xf]
          %v576 = vld [vmem:[#allocation12 + $0x24] sm:$0xf]
          %v577 = vld [vmem:[#allocation12 + $0x28] sm:$0xf]
          %v578 = vld [vmem:[#allocation12 + $0x2c] sm:$0xf]
          %v579 = vld [vmem:[#allocation12 + $0x30] sm:$0xf]
          %v580 = vld [vmem:[#allocation12 + $0x34] sm:$0xf]
          %v581 = vld [vmem:[#allocation12 + $0x38] sm:$0xf]
          %v582 = vld [vmem:[#allocation12 + $0x3c] sm:$0xf]
          %v599 = vunpack.c.l.b16 %v567
          %v600 = vunpack.c.l.b16 %v568
          %v601 = vunpack.c.l.b16 %v569
          %v602 = vunpack.c.l.b16 %v570
          %v603 = vunpack.c.l.b16 %v571
          %v604 = vunpack.c.l.b16 %v572
          %v605 = vunpack.c.l.b16 %v573
          %v606 = vunpack.c.l.b16 %v574
          %v607 = vunpack.c.l.b16 %v575
          %v608 = vunpack.c.l.b16 %v576
          %v609 = vunpack.c.l.b16 %v577
          %v610 = vunpack.c.l.b16 %v578
          %v611 = vunpack.c.l.b16 %v579
          %v612 = vunpack.c.l.b16 %v580
          %v613 = vunpack.c.l.b16 %v581
          %v614 = vunpack.c.l.b16 %v582
          %v615 = vpack.c.b16 %v600, %v599
          %v616 = vpack.c.b16 %v602, %v601
          %v617 = vpack.c.b16 %v604, %v603
          %v618 = vpack.c.b16 %v606, %v605
          %v619 = vpack.c.b16 %v608, %v607
          %v620 = vpack.c.b16 %v610, %v609
          %v621 = vpack.c.b16 %v612, %v611
          %v622 = vpack.c.b16 %v614, %v613
          %631 = vmatprep.subr.bf16.mxu0 0
          %632 = vmatpush1.bf16.msra.mxu0 %v615
          %633 = vmatprep.subr.bf16.mxu0 0
          %634 = vmatpush1.bf16.msra.mxu0 %v616
          %635 = vmatprep.subr.bf16.mxu0 0
          %636 = vmatpush1.bf16.msra.mxu0 %v617
          %637 = vmatprep.subr.bf16.mxu0 0
          %638 = vmatpush1.bf16.msra.mxu0 %v618
          %639 = vmatprep.subr.bf16.mxu0 0
          %640 = vmatpush1.bf16.msra.mxu0 %v619
          %641 = vmatprep.subr.bf16.mxu0 0
          %642 = vmatpush1.bf16.msra.mxu0 %v620
          %643 = vmatprep.subr.bf16.mxu0 0
          %644 = vmatpush1.bf16.msra.mxu0 %v621
          %645 = vmatprep.subr.bf16.mxu0 0
          %646 = vmatpush1.bf16.msra.mxu0 %v622
          %647 = vmatprep.subr.bf16.mxu0 0
          %648 = vmatpush1.bf16.msra.mxu0 0
          %649 = vmatprep.subr.bf16.mxu0 0
          %650 = vmatpush1.bf16.msra.mxu0 0
          %651 = vmatprep.subr.bf16.mxu0 0
          %652 = vmatpush1.bf16.msra.mxu0 0
          %653 = vmatprep.subr.bf16.mxu0 0
          %654 = vmatpush1.bf16.msra.mxu0 0
          %655 = vmatprep.subr.bf16.mxu0 0
          %656 = vmatpush1.bf16.msra.mxu0 0
          %657 = vmatprep.subr.bf16.mxu0 0
          %658 = vmatpush1.bf16.msra.mxu0 0
          %659 = vmatprep.subr.bf16.mxu0 0
          %660 = vmatpush1.bf16.msra.mxu0 0
          %661 = vmatprep.subr.bf16.mxu0 0
          %662 = vmatpush1.bf16.msra.mxu0 0
          %663 = vmatprep.mubr.bf16.mxu0 0
          %664 = vmatmul.mubr.bf16.gmra.mrb[0].mxu0 %v461
          %v665 = vpop.f32.mrb[0].mxu0
          %v666 = vadd.f32 0.0, %v665
          %v667 = vpop.f32.mrb[0].mxu0
          %v668 = vpop.f32.mrb[0].mxu0
          %v669 = vadd.f32 0.0, %v668
          %v670 = vpop.f32.mrb[0].mxu0
          %671 = vdwg.mxu0
          %674 = vrot.lane.b32.xlu0 %v561, 96
          %v675 = vpop.permute.xlu0 %674
          %676 = vrot.lane.b32.xlu0 %v564, 96
          %v677 = vpop.permute.xlu0 %676
          %680 = vrot.lane.b32.xlu0 %v561, 64
          %v681 = vpop.permute.xlu0 %680
          %682 = vrot.lane.b32.xlu0 %v564, 64
          %v683 = vpop.permute.xlu0 %682
          %686 = vrot.lane.b32.xlu0 %v561, 32
          %v687 = vpop.permute.xlu0 %686
          %688 = vrot.lane.b32.xlu0 %v564, 32
          %v689 = vpop.permute.xlu0 %688
          %v692 = vpack.c.bf16 %v564, %v561
          %v693 = vpack.c.bf16 %v677, %v675
          %v694 = vpack.c.bf16 %v683, %v681
          %v695 = vpack.c.bf16 %v689, %v687
          %vm696 = vcmask 261120
          %697 = vst.msk [vmem:[#allocation2] sm:$0xff] %vm696, %v692
          %698 = vst.msk [vmem:[#allocation2 + $0x8] sm:$0xff] %vm696, %v693
          %699 = vst.msk [vmem:[#allocation2 + $0x10] sm:$0xff] %vm696, %v694
          %700 = vst.msk [vmem:[#allocation2 + $0x18] sm:$0xff] %vm696, %v695
          %703 = vrot.lane.b32.xlu0 %v666, 96
          %v704 = vpop.permute.xlu0 %703
          %705 = vrot.lane.b32.xlu0 %v669, 96
          %v706 = vpop.permute.xlu0 %705
          %709 = vrot.lane.b32.xlu0 %v666, 64
          %v710 = vpop.permute.xlu0 %709
          %711 = vrot.lane.b32.xlu0 %v669, 64
          %v712 = vpop.permute.xlu0 %711
          %715 = vrot.lane.b32.xlu0 %v666, 32
          %v716 = vpop.permute.xlu0 %715
          %717 = vrot.lane.b32.xlu0 %v669, 32
          %v718 = vpop.permute.xlu0 %717
          %v721 = vpack.c.bf16 %v669, %v666
          %v722 = vpack.c.bf16 %v706, %v704
          %v723 = vpack.c.bf16 %v712, %v710
          %v724 = vpack.c.bf16 %v718, %v716
          %725 = vst.msk [vmem:[#allocation3] sm:$0xff] %vm696, %v721
          %726 = vst.msk [vmem:[#allocation3 + $0x8] sm:$0xff] %vm696, %v722
          %727 = vst.msk [vmem:[#allocation3 + $0x10] sm:$0xff] %vm696, %v723
          %728 = vst.msk [vmem:[#allocation3 + $0x18] sm:$0xff] %vm696, %v724
        $region80: #{tpu_custom_call.1} parent=55 // pred_fallthru
          _
        %v729 = vld [vmem:[%s400] sm:$0xff]
        %v730 = vld [vmem:[%s400 + $0x8] sm:$0xff]
        %v731 = vpack.c.bf16 %v730, %v729
        %v732 = vld [vmem:[#allocation9] sm:$0xf]
        %v733 = vld [vmem:[#allocation9 + $0x4] sm:$0xf]
        %v734 = vld [vmem:[#allocation9 + $0x8] sm:$0xf]
        %v735 = vld [vmem:[#allocation9 + $0xc] sm:$0xf]
        %v736 = vld [vmem:[#allocation9 + $0x10] sm:$0xf]
        %v737 = vld [vmem:[#allocation9 + $0x14] sm:$0xf]
        %v738 = vld [vmem:[#allocation9 + $0x18] sm:$0xf]
        %v739 = vld [vmem:[#allocation9 + $0x1c] sm:$0xf]
        %v740 = vld [vmem:[#allocation9 + $0x20] sm:$0xf]
        %v741 = vld [vmem:[#allocation9 + $0x24] sm:$0xf]
        %v742 = vld [vmem:[#allocation9 + $0x28] sm:$0xf]
        %v743 = vld [vmem:[#allocation9 + $0x2c] sm:$0xf]
        %v744 = vld [vmem:[#allocation9 + $0x30] sm:$0xf]
        %v745 = vld [vmem:[#allocation9 + $0x34] sm:$0xf]
        %v746 = vld [vmem:[#allocation9 + $0x38] sm:$0xf]
        %v747 = vld [vmem:[#allocation9 + $0x3c] sm:$0xf]
        %v764 = vunpack.c.l.b16 %v732
        %v765 = vunpack.c.l.b16 %v733
        %v766 = vunpack.c.l.b16 %v734
        %v767 = vunpack.c.l.b16 %v735
        %v768 = vunpack.c.l.b16 %v736
        %v769 = vunpack.c.l.b16 %v737
        %v770 = vunpack.c.l.b16 %v738
        %v771 = vunpack.c.l.b16 %v739
        %v772 = vunpack.c.l.b16 %v740
        %v773 = vunpack.c.l.b16 %v741
        %v774 = vunpack.c.l.b16 %v742
        %v775 = vunpack.c.l.b16 %v743
        %v776 = vunpack.c.l.b16 %v744
        %v777 = vunpack.c.l.b16 %v745
        %v778 = vunpack.c.l.b16 %v746
        %v779 = vunpack.c.l.b16 %v747
        %v780 = vpack.c.b16 %v765, %v764
        %v781 = vpack.c.b16 %v767, %v766
        %v782 = vpack.c.b16 %v769, %v768
        %v783 = vpack.c.b16 %v771, %v770
        %v784 = vpack.c.b16 %v773, %v772
        %v785 = vpack.c.b16 %v775, %v774
        %v786 = vpack.c.b16 %v777, %v776
        %v787 = vpack.c.b16 %v779, %v778
        %796 = vmatprep.subr.bf16.mxu0 0
        %797 = vmatpush1.bf16.msra.mxu0 %v780
        %798 = vmatprep.subr.bf16.mxu0 0
        %799 = vmatpush1.bf16.msra.mxu0 %v781
        %800 = vmatprep.subr.bf16.mxu0 0
        %801 = vmatpush1.bf16.msra.mxu0 %v782
        %802 = vmatprep.subr.bf16.mxu0 0
        %803 = vmatpush1.bf16.msra.mxu0 %v783
        %804 = vmatprep.subr.bf16.mxu0 0
        %805 = vmatpush1.bf16.msra.mxu0 %v784
        %806 = vmatprep.subr.bf16.mxu0 0
        %807 = vmatpush1.bf16.msra.mxu0 %v785
        %808 = vmatprep.subr.bf16.mxu0 0
        %809 = vmatpush1.bf16.msra.mxu0 %v786
        %810 = vmatprep.subr.bf16.mxu0 0
        %811 = vmatpush1.bf16.msra.mxu0 %v787
        %812 = vmatprep.subr.bf16.mxu0 0
        %813 = vmatpush1.bf16.msra.mxu0 0
        %814 = vmatprep.subr.bf16.mxu0 0
        %815 = vmatpush1.bf16.msra.mxu0 0
        %816 = vmatprep.subr.bf16.mxu0 0
        %817 = vmatpush1.bf16.msra.mxu0 0
        %818 = vmatprep.subr.bf16.mxu0 0
        %819 = vmatpush1.bf16.msra.mxu0 0
        %820 = vmatprep.subr.bf16.mxu0 0
        %821 = vmatpush1.bf16.msra.mxu0 0
        %822 = vmatprep.subr.bf16.mxu0 0
        %823 = vmatpush1.bf16.msra.mxu0 0
        %824 = vmatprep.subr.bf16.mxu0 0
        %825 = vmatpush1.bf16.msra.mxu0 0
        %826 = vmatprep.subr.bf16.mxu0 0
        %827 = vmatpush1.bf16.msra.mxu0 0
        %828 = vmatprep.mubr.bf16.mxu0 0
        %829 = vmatmul.mubr.bf16.gmra.mrb[0].mxu0 %v731
        %v830 = vpop.f32.mrb[0].mxu0
        %v831 = vadd.f32 0.0, %v830
        %v832 = vpop.f32.mrb[0].mxu0
        %v833 = vpop.f32.mrb[0].mxu0
        %v834 = vadd.f32 0.0, %v833
        %v835 = vpop.f32.mrb[0].mxu0
        %836 = vdwg.mxu0
        %v837 = vmul.f32 %v831, 0.17677669
        %v838 = vmul.f32 %v834, 0.17677669
        %841 = vrot.lane.b32.xlu0 %v837, 96
        %v842 = vpop.permute.xlu0 %841
        %843 = vrot.lane.b32.xlu0 %v838, 96
        %v844 = vpop.permute.xlu0 %843
        %847 = vrot.lane.b32.xlu0 %v837, 64
        %v848 = vpop.permute.xlu0 %847
        %849 = vrot.lane.b32.xlu0 %v838, 64
        %v850 = vpop.permute.xlu0 %849
        %853 = vrot.lane.b32.xlu0 %v837, 32
        %v854 = vpop.permute.xlu0 %853
        %855 = vrot.lane.b32.xlu0 %v838, 32
        %v856 = vpop.permute.xlu0 %855
        %v859 = vpack.c.bf16 %v838, %v837
        %v860 = vpack.c.bf16 %v844, %v842
        %v861 = vpack.c.bf16 %v850, %v848
        %v862 = vpack.c.bf16 %v856, %v854
        %v863 = vld [vmem:[#allocation2] sm:$0xff]
        %v864 = vld [vmem:[#allocation2 + $0x8] sm:$0xff]
        %v865 = vld [vmem:[#allocation2 + $0x10] sm:$0xff]
        %v866 = vld [vmem:[#allocation2 + $0x18] sm:$0xff]
        %v867 = vld [vmem:[#allocation3] sm:$0xff]
        %v868 = vld [vmem:[#allocation3 + $0x8] sm:$0xff]
        %v869 = vld [vmem:[#allocation3 + $0x10] sm:$0xff]
        %v870 = vld [vmem:[#allocation3 + $0x18] sm:$0xff]
        %vm871 = vcmask 261120
        %v873 = vsel %vm871, %v859, 0
        %v876 = vsel %vm871, %v863, 0
        %878 = vmatprep.subr.bf16.mxu0 0
        %879 = vmatpush1.bf16.xpose.msra.mxu0 %v876
        %880 = vmatprep.subr.bf16.mxu0 0
        %881 = vmatpush1.bf16.xpose.msra.mxu0 0
        %882 = vmatprep.subr.bf16.mxu0 0
        %883 = vmatpush1.bf16.xpose.msra.mxu0 0
        %884 = vmatprep.subr.bf16.mxu0 0
        %885 = vmatpush1.bf16.xpose.msra.mxu0 0
        %886 = vmatprep.subr.bf16.mxu0 0
        %887 = vmatpush1.bf16.xpose.msra.mxu0 0
        %888 = vmatprep.subr.bf16.mxu0 0
        %889 = vmatpush1.bf16.xpose.msra.mxu0 0
        %890 = vmatprep.subr.bf16.mxu0 0
        %891 = vmatpush1.bf16.xpose.msra.mxu0 0
        %892 = vmatprep.subr.bf16.mxu0 0
        %893 = vmatpush1.bf16.xpose.msra.mxu0 0
        %894 = vmatprep.subr.bf16.mxu0 0
        %895 = vmatpush1.bf16.xpose.msra.mxu0 0
        %896 = vmatprep.subr.bf16.mxu0 0
        %897 = vmatpush1.bf16.xpose.msra.mxu0 0
        %898 = vmatprep.subr.bf16.mxu0 0
        %899 = vmatpush1.bf16.xpose.msra.mxu0 0
        %900 = vmatprep.subr.bf16.mxu0 0
        %901 = vmatpush1.bf16.xpose.msra.mxu0 0
        %902 = vmatprep.subr.bf16.mxu0 0
        %903 = vmatpush1.bf16.xpose.msra.mxu0 0
        %904 = vmatprep.subr.bf16.mxu0 0
        %905 = vmatpush1.bf16.xpose.msra.mxu0 0
        %906 = vmatprep.subr.bf16.mxu0 0
        %907 = vmatpush1.bf16.xpose.msra.mxu0 0
        %908 = vmatprep.subr.bf16.mxu0 0
        %909 = vmatpush1.bf16.xpose.msra.mxu0 0
        %910 = vmatprep.mubr.bf16.mxu0 0
        %911 = vmatmul.mubr.bf16.gmra.mrb[0].mxu0 %v873
        %v912 = vpop.f32.mrb[0].mxu0
        %v913 = vadd.f32 0.0, %v912
        %v914 = vpop.f32.mrb[0].mxu0
        %v915 = vpop.f32.mrb[0].mxu0
        %v916 = vadd.f32 0.0, %v915
        %v917 = vpop.f32.mrb[0].mxu0
        %918 = vdwg.mxu0
        %v920 = vsel %vm871, %v860, 0
        %v923 = vsel %vm871, %v864, 0
        %925 = vmatprep.subr.bf16.mxu0 0
        %926 = vmatpush1.bf16.xpose.msra.mxu0 %v923
        %927 = vmatprep.subr.bf16.mxu0 0
        %928 = vmatpush1.bf16.xpose.msra.mxu0 0
        %929 = vmatprep.subr.bf16.mxu0 0
        %930 = vmatpush1.bf16.xpose.msra.mxu0 0
        %931 = vmatprep.subr.bf16.mxu0 0
        %932 = vmatpush1.bf16.xpose.msra.mxu0 0
        %933 = vmatprep.subr.bf16.mxu0 0
        %934 = vmatpush1.bf16.xpose.msra.mxu0 0
        %935 = vmatprep.subr.bf16.mxu0 0
        %936 = vmatpush1.bf16.xpose.msra.mxu0 0
        %937 = vmatprep.subr.bf16.mxu0 0
        %938 = vmatpush1.bf16.xpose.msra.mxu0 0
        %939 = vmatprep.subr.bf16.mxu0 0
        %940 = vmatpush1.bf16.xpose.msra.mxu0 0
        %941 = vmatprep.subr.bf16.mxu0 0
        %942 = vmatpush1.bf16.xpose.msra.mxu0 0
        %943 = vmatprep.subr.bf16.mxu0 0
        %944 = vmatpush1.bf16.xpose.msra.mxu0 0
        %945 = vmatprep.subr.bf16.mxu0 0
        %946 = vmatpush1.bf16.xpose.msra.mxu0 0
        %947 = vmatprep.subr.bf16.mxu0 0
        %948 = vmatpush1.bf16.xpose.msra.mxu0 0
        %949 = vmatprep.subr.bf16.mxu0 0
        %950 = vmatpush1.bf16.xpose.msra.mxu0 0
        %951 = vmatprep.subr.bf16.mxu0 0
        %952 = vmatpush1.bf16.xpose.msra.mxu0 0
        %953 = vmatprep.subr.bf16.mxu0 0
        %954 = vmatpush1.bf16.xpose.msra.mxu0 0
        %955 = vmatprep.subr.bf16.mxu0 0
        %956 = vmatpush1.bf16.xpose.msra.mxu0 0
        %957 = vmatprep.mubr.bf16.mxu0 0
        %958 = vmatmul.mubr.bf16.gmra.mrb[0].mxu0 %v920
        %v959 = vpop.f32.mrb[0].mxu0
        %v960 = vadd.f32 0.0, %v959
        %v961 = vpop.f32.mrb[0].mxu0
        %v962 = vpop.f32.mrb[0].mxu0
        %v963 = vadd.f32 0.0, %v962
        %v964 = vpop.f32.mrb[0].mxu0
        %965 = vdwg.mxu0
        %v967 = vsel %vm871, %v861, 0
        %v970 = vsel %vm871, %v865, 0
        %972 = vmatprep.subr.bf16.mxu0 0
        %973 = vmatpush1.bf16.xpose.msra.mxu0 %v970
        %974 = vmatprep.subr.bf16.mxu0 0
        %975 = vmatpush1.bf16.xpose.msra.mxu0 0
        %976 = vmatprep.subr.bf16.mxu0 0
        %977 = vmatpush1.bf16.xpose.msra.mxu0 0
        %978 = vmatprep.subr.bf16.mxu0 0
        %979 = vmatpush1.bf16.xpose.msra.mxu0 0
        %980 = vmatprep.subr.bf16.mxu0 0
        %981 = vmatpush1.bf16.xpose.msra.mxu0 0
        %982 = vmatprep.subr.bf16.mxu0 0
        %983 = vmatpush1.bf16.xpose.msra.mxu0 0
        %984 = vmatprep.subr.bf16.mxu0 0
        %985 = vmatpush1.bf16.xpose.msra.mxu0 0
        %986 = vmatprep.subr.bf16.mxu0 0
        %987 = vmatpush1.bf16.xpose.msra.mxu0 0
        %988 = vmatprep.subr.bf16.mxu0 0
        %989 = vmatpush1.bf16.xpose.msra.mxu0 0
        %990 = vmatprep.subr.bf16.mxu0 0
        %991 = vmatpush1.bf16.xpose.msra.mxu0 0
        %992 = vmatprep.subr.bf16.mxu0 0
        %993 = vmatpush1.bf16.xpose.msra.mxu0 0
        %994 = vmatprep.subr.bf16.mxu0 0
        %995 = vmatpush1.bf16.xpose.msra.mxu0 0
        %996 = vmatprep.subr.bf16.mxu0 0
        %997 = vmatpush1.bf16.xpose.msra.mxu0 0
        %998 = vmatprep.subr.bf16.mxu0 0
        %999 = vmatpush1.bf16.xpose.msra.mxu0 0
        %1000 = vmatprep.subr.bf16.mxu0 0
        %1001 = vmatpush1.bf16.xpose.msra.mxu0 0
        %1002 = vmatprep.subr.bf16.mxu0 0
        %1003 = vmatpush1.bf16.xpose.msra.mxu0 0
        %1004 = vmatprep.mubr.bf16.mxu0 0
        %1005 = vmatmul.mubr.bf16.gmra.mrb[0].mxu0 %v967
        %v1006 = vpop.f32.mrb[0].mxu0
        %v1007 = vadd.f32 0.0, %v1006
        %v1008 = vpop.f32.mrb[0].mxu0
        %v1009 = vpop.f32.mrb[0].mxu0
        %v1010 = vadd.f32 0.0, %v1009
        %v1011 = vpop.f32.mrb[0].mxu0
        %1012 = vdwg.mxu0
        %v1014 = vsel %vm871, %v862, 0
        %v1017 = vsel %vm871, %v866, 0
        %1019 = vmatprep.subr.bf16.mxu0 0
        %1020 = vmatpush1.bf16.xpose.msra.mxu0 %v1017
        %1021 = vmatprep.subr.bf16.mxu0 0
        %1022 = vmatpush1.bf16.xpose.msra.mxu0 0
        %1023 = vmatprep.subr.bf16.mxu0 0
        %1024 = vmatpush1.bf16.xpose.msra.mxu0 0
        %1025 = vmatprep.subr.bf16.mxu0 0
        %1026 = vmatpush1.bf16.xpose.msra.mxu0 0
        %1027 = vmatprep.subr.bf16.mxu0 0
        %1028 = vmatpush1.bf16.xpose.msra.mxu0 0
        %1029 = vmatprep.subr.bf16.mxu0 0
        %1030 = vmatpush1.bf16.xpose.msra.mxu0 0
        %1031 = vmatprep.subr.bf16.mxu0 0
        %1032 = vmatpush1.bf16.xpose.msra.mxu0 0
        %1033 = vmatprep.subr.bf16.mxu0 0
        %1034 = vmatpush1.bf16.xpose.msra.mxu0 0
        %1035 = vmatprep.subr.bf16.mxu0 0
        %1036 = vmatpush1.bf16.xpose.msra.mxu0 0
        %1037 = vmatprep.subr.bf16.mxu0 0
        %1038 = vmatpush1.bf16.xpose.msra.mxu0 0
        %1039 = vmatprep.subr.bf16.mxu0 0
        %1040 = vmatpush1.bf16.xpose.msra.mxu0 0
        %1041 = vmatprep.subr.bf16.mxu0 0
        %1042 = vmatpush1.bf16.xpose.msra.mxu0 0
        %1043 = vmatprep.subr.bf16.mxu0 0
        %1044 = vmatpush1.bf16.xpose.msra.mxu0 0
        %1045 = vmatprep.subr.bf16.mxu0 0
        %1046 = vmatpush1.bf16.xpose.msra.mxu0 0
        %1047 = vmatprep.subr.bf16.mxu0 0
        %1048 = vmatpush1.bf16.xpose.msra.mxu0 0
        %1049 = vmatprep.subr.bf16.mxu0 0
        %1050 = vmatpush1.bf16.xpose.msra.mxu0 0
        %1051 = vmatprep.mubr.bf16.mxu0 0
        %1052 = vmatmul.mubr.bf16.gmra.mrb[0].mxu0 %v1014
        %v1053 = vpop.f32.mrb[0].mxu0
        %v1054 = vadd.f32 0.0, %v1053
        %v1055 = vpop.f32.mrb[0].mxu0
        %v1056 = vpop.f32.mrb[0].mxu0
        %v1057 = vadd.f32 0.0, %v1056
        %v1058 = vpop.f32.mrb[0].mxu0
        %1059 = vdwg.mxu0
        %v1060 = vld [vmem:[%s5] sm:$0x1]
        %v1061 = vld [vmem:[%s5 + $0x1] sm:$0x1]
        %v1062 = vld [vmem:[%s5 + $0x2] sm:$0x1]
        %v1063 = vld [vmem:[%s5 + $0x3] sm:$0x1]
        %v1068 = vlaneseq
        %v1069 = vshrl.u32 %v1068, 7
        %v1070 = vsub.s32 0, %v1069
        %v1071 = vrot.slane %v1060, %v1070
        %v1072 = vlaneseq
        %v1073 = vshrl.u32 %v1072, 7
        %v1074 = vsub.s32 0, %v1073
        %v1075 = vrot.slane %v1061, %v1074
        %v1076 = vlaneseq
        %v1077 = vshrl.u32 %v1076, 7
        %v1078 = vsub.s32 0, %v1077
        %v1079 = vrot.slane %v1062, %v1078
        %v1080 = vlaneseq
        %v1081 = vshrl.u32 %v1080, 7
        %v1082 = vsub.s32 0, %v1081
        %v1083 = vrot.slane %v1063, %v1082
        %1084 = vset.pattern.permute.xlu0 0
        %1085 = vperm.xlu0 %1084, %v1071
        %v1086 = vpop.permute.xlu0 %1085
        %1088 = vset.pattern.permute.xlu0 0
        %1089 = vperm.xlu0 %1088, %v1075
        %v1090 = vpop.permute.xlu0 %1089
        %1092 = vset.pattern.permute.xlu0 0
        %1093 = vperm.xlu0 %1092, %v1079
        %v1094 = vpop.permute.xlu0 %1093
        %1096 = vset.pattern.permute.xlu0 0
        %1097 = vperm.xlu0 %1096, %v1083
        %v1098 = vpop.permute.xlu0 %1097
        %v1100 = vmul.f32 %v913, %v1086
        %v1101 = vmul.f32 %v916, %v1086
        %v1102 = vmul.f32 %v960, %v1090
        %v1103 = vmul.f32 %v963, %v1090
        %v1104 = vmul.f32 %v1007, %v1094
        %v1105 = vmul.f32 %v1010, %v1094
        %v1106 = vmul.f32 %v1054, %v1098
        %v1107 = vmul.f32 %v1057, %v1098
        %v1108 = vadd.f32 %v1100, %v1102
        %v1109 = vadd.f32 %v1101, %v1103
        %v1110 = vadd.f32 %v1108, %v1104
        %v1111 = vadd.f32 %v1109, %v1105
        %v1112 = vadd.f32 %v1110, %v1106
        %v1113 = vadd.f32 %v1111, %v1107
        %s1114 = scalar_lea.vmem %s5, 4
        %v1115 = vld [vmem:[%s1114] sm:$0x1]
        %v1116 = vld [vmem:[%s1114 + $0x1] sm:$0x1]
        %v1117 = vld [vmem:[%s1114 + $0x2] sm:$0x1]
        %v1118 = vld [vmem:[%s1114 + $0x3] sm:$0x1]
        %v1123 = vlaneseq
        %v1124 = vshrl.u32 %v1123, 7
        %v1125 = vsub.s32 0, %v1124
        %v1126 = vrot.slane %v1115, %v1125
        %v1127 = vlaneseq
        %v1128 = vshrl.u32 %v1127, 7
        %v1129 = vsub.s32 0, %v1128
        %v1130 = vrot.slane %v1116, %v1129
        %v1131 = vlaneseq
        %v1132 = vshrl.u32 %v1131, 7
        %v1133 = vsub.s32 0, %v1132
        %v1134 = vrot.slane %v1117, %v1133
        %v1135 = vlaneseq
        %v1136 = vshrl.u32 %v1135, 7
        %v1137 = vsub.s32 0, %v1136
        %v1138 = vrot.slane %v1118, %v1137
        %1139 = vset.pattern.permute.xlu0 0
        %1140 = vperm.xlu0 %1139, %v1126
        %v1141 = vpop.permute.xlu0 %1140
        %1143 = vset.pattern.permute.xlu0 0
        %1144 = vperm.xlu0 %1143, %v1130
        %v1145 = vpop.permute.xlu0 %1144
        %1147 = vset.pattern.permute.xlu0 0
        %1148 = vperm.xlu0 %1147, %v1134
        %v1149 = vpop.permute.xlu0 %1148
        %1151 = vset.pattern.permute.xlu0 0
        %1152 = vperm.xlu0 %1151, %v1138
        %v1153 = vpop.permute.xlu0 %1152
        %v1155 = vmul.f32 %v913, %v1141
        %v1156 = vmul.f32 %v916, %v1141
        %v1157 = vmul.f32 %v960, %v1145
        %v1158 = vmul.f32 %v963, %v1145
        %v1159 = vmul.f32 %v1007, %v1149
        %v1160 = vmul.f32 %v1010, %v1149
        %v1161 = vmul.f32 %v1054, %v1153
        %v1162 = vmul.f32 %v1057, %v1153
        %v1163 = vadd.f32 %v1155, %v1157
        %v1164 = vadd.f32 %v1156, %v1158
        %v1165 = vadd.f32 %v1163, %v1159
        %v1166 = vadd.f32 %v1164, %v1160
        %v1167 = vadd.f32 %v1165, %v1161
        %v1168 = vadd.f32 %v1166, %v1162
        %s1169 = scalar_lea.vmem %s5, 8
        %v1170 = vld [vmem:[%s1169] sm:$0x1]
        %v1171 = vld [vmem:[%s1169 + $0x1] sm:$0x1]
        %v1172 = vld [vmem:[%s1169 + $0x2] sm:$0x1]
        %v1173 = vld [vmem:[%s1169 + $0x3] sm:$0x1]
        %v1178 = vlaneseq
        %v1179 = vshrl.u32 %v1178, 7
        %v1180 = vsub.s32 0, %v1179
        %v1181 = vrot.slane %v1170, %v1180
        %v1182 = vlaneseq
        %v1183 = vshrl.u32 %v1182, 7
        %v1184 = vsub.s32 0, %v1183
        %v1185 = vrot.slane %v1171, %v1184
        %v1186 = vlaneseq
        %v1187 = vshrl.u32 %v1186, 7
        %v1188 = vsub.s32 0, %v1187
        %v1189 = vrot.slane %v1172, %v1188
        %v1190 = vlaneseq
        %v1191 = vshrl.u32 %v1190, 7
        %v1192 = vsub.s32 0, %v1191
        %v1193 = vrot.slane %v1173, %v1192
        %1194 = vset.pattern.permute.xlu0 0
        %1195 = vperm.xlu0 %1194, %v1181
        %v1196 = vpop.permute.xlu0 %1195
        %1198 = vset.pattern.permute.xlu0 0
        %1199 = vperm.xlu0 %1198, %v1185
        %v1200 = vpop.permute.xlu0 %1199
        %1202 = vset.pattern.permute.xlu0 0
        %1203 = vperm.xlu0 %1202, %v1189
        %v1204 = vpop.permute.xlu0 %1203
        %1206 = vset.pattern.permute.xlu0 0
        %1207 = vperm.xlu0 %1206, %v1193
        %v1208 = vpop.permute.xlu0 %1207
        %v1210 = vmul.f32 %v913, %v1196
        %v1211 = vmul.f32 %v916, %v1196
        %v1212 = vmul.f32 %v960, %v1200
        %v1213 = vmul.f32 %v963, %v1200
        %v1214 = vmul.f32 %v1007, %v1204
        %v1215 = vmul.f32 %v1010, %v1204
        %v1216 = vmul.f32 %v1054, %v1208
        %v1217 = vmul.f32 %v1057, %v1208
        %v1218 = vadd.f32 %v1210, %v1212
        %v1219 = vadd.f32 %v1211, %v1213
        %v1220 = vadd.f32 %v1218, %v1214
        %v1221 = vadd.f32 %v1219, %v1215
        %v1222 = vadd.f32 %v1220, %v1216
        %v1223 = vadd.f32 %v1221, %v1217
        %s1224 = scalar_lea.vmem %s5, 12
        %v1225 = vld [vmem:[%s1224] sm:$0x1]
        %v1226 = vld [vmem:[%s1224 + $0x1] sm:$0x1]
        %v1227 = vld [vmem:[%s1224 + $0x2] sm:$0x1]
        %v1228 = vld [vmem:[%s1224 + $0x3] sm:$0x1]
        %v1233 = vlaneseq
        %v1234 = vshrl.u32 %v1233, 7
        %v1235 = vsub.s32 0, %v1234
        %v1236 = vrot.slane %v1225, %v1235
        %v1237 = vlaneseq
        %v1238 = vshrl.u32 %v1237, 7
        %v1239 = vsub.s32 0, %v1238
        %v1240 = vrot.slane %v1226, %v1239
        %v1241 = vlaneseq
        %v1242 = vshrl.u32 %v1241, 7
        %v1243 = vsub.s32 0, %v1242
        %v1244 = vrot.slane %v1227, %v1243
        %v1245 = vlaneseq
        %v1246 = vshrl.u32 %v1245, 7
        %v1247 = vsub.s32 0, %v1246
        %v1248 = vrot.slane %v1228, %v1247
        %1249 = vset.pattern.permute.xlu0 0
        %1250 = vperm.xlu0 %1249, %v1236
        %v1251 = vpop.permute.xlu0 %1250
        %1253 = vset.pattern.permute.xlu0 0
        %1254 = vperm.xlu0 %1253, %v1240
        %v1255 = vpop.permute.xlu0 %1254
        %1257 = vset.pattern.permute.xlu0 0
        %1258 = vperm.xlu0 %1257, %v1244
        %v1259 = vpop.permute.xlu0 %1258
        %1261 = vset.pattern.permute.xlu0 0
        %1262 = vperm.xlu0 %1261, %v1248
        %v1263 = vpop.permute.xlu0 %1262
        %v1265 = vmul.f32 %v913, %v1251
        %v1266 = vmul.f32 %v916, %v1251
        %v1267 = vmul.f32 %v960, %v1255
        %v1268 = vmul.f32 %v963, %v1255
        %v1269 = vmul.f32 %v1007, %v1259
        %v1270 = vmul.f32 %v1010, %v1259
        %v1271 = vmul.f32 %v1054, %v1263
        %v1272 = vmul.f32 %v1057, %v1263
        %v1273 = vadd.f32 %v1265, %v1267
        %v1274 = vadd.f32 %v1266, %v1268
        %v1275 = vadd.f32 %v1273, %v1269
        %v1276 = vadd.f32 %v1274, %v1270
        %v1277 = vadd.f32 %v1275, %v1271
        %v1278 = vadd.f32 %v1276, %v1272
        %vm1279 = vcmask 130048
        %v1280 = vsel %vm1279, %v1112, -inf
        %1281 = vmax.xlane.f32.xlu0 %v1280
        %v1282 = vpop.xlane.xlu0 %1281
        %v1283 = vsel %vm1279, %v1113, -inf
        %1284 = vmax.xlane.f32.xlu0 %v1283
        %v1285 = vpop.xlane.xlu0 %1284
        %v1286 = vsel %vm1279, %v1167, -inf
        %1287 = vmax.xlane.f32.xlu0 %v1286
        %v1288 = vpop.xlane.xlu0 %1287
        %v1289 = vsel %vm1279, %v1168, -inf
        %1290 = vmax.xlane.f32.xlu0 %v1289
        %v1291 = vpop.xlane.xlu0 %1290
        %v1292 = vsel %vm1279, %v1222, -inf
        %1293 = vmax.xlane.f32.xlu0 %v1292
        %v1294 = vpop.xlane.xlu0 %1293
        %v1295 = vsel %vm1279, %v1223, -inf
        %1296 = vmax.xlane.f32.xlu0 %v1295
        %v1297 = vpop.xlane.xlu0 %1296
        %v1298 = vsel %vm1279, %v1277, -inf
        %1299 = vmax.xlane.f32.xlu0 %v1298
        %v1300 = vpop.xlane.xlu0 %1299
        %v1301 = vsel %vm1279, %v1278, -inf
        %1302 = vmax.xlane.f32.xlu0 %v1301
        %v1303 = vpop.xlane.xlu0 %1302
        %v1304 = vsub.f32 %v1112, %v1282
        %v1305 = vsub.f32 %v1113, %v1285
        %v1306 = vsub.f32 %v1167, %v1288
        %v1307 = vsub.f32 %v1168, %v1291
        %v1308 = vsub.f32 %v1222, %v1294
        %v1309 = vsub.f32 %v1223, %v1297
        %v1310 = vsub.f32 %v1277, %v1300
        %v1311 = vsub.f32 %v1278, %v1303
        %v1312 = vmul.f32 %v1304, 1.442695
        %v1313 = vpow.pop %v1312
        %v1314 = vmul.f32 %v1305, 1.442695
        %v1315 = vpow.pop %v1314
        %v1316 = vmul.f32 %v1306, 1.442695
        %v1317 = vpow.pop %v1316
        %v1318 = vmul.f32 %v1307, 1.442695
        %v1319 = vpow.pop %v1318
        %v1320 = vmul.f32 %v1308, 1.442695
        %v1321 = vpow.pop %v1320
        %v1322 = vmul.f32 %v1309, 1.442695
        %v1323 = vpow.pop %v1322
        %v1324 = vmul.f32 %v1310, 1.442695
        %v1325 = vpow.pop %v1324
        %v1326 = vmul.f32 %v1311, 1.442695
        %v1327 = vpow.pop %v1326
        %v1328 = vsel %vm1279, %v1313, 0.0
        %1329 = vadd.xlane.f32.xlu0 %v1328
        %v1330 = vpop.xlane.xlu0 %1329
        %v1331 = vsel %vm1279, %v1315, 0.0
        %1332 = vadd.xlane.f32.xlu0 %v1331
        %v1333 = vpop.xlane.xlu0 %1332
        %v1334 = vsel %vm1279, %v1317, 0.0
        %1335 = vadd.xlane.f32.xlu0 %v1334
        %v1336 = vpop.xlane.xlu0 %1335
        %v1337 = vsel %vm1279, %v1319, 0.0
        %1338 = vadd.xlane.f32.xlu0 %v1337
        %v1339 = vpop.xlane.xlu0 %1338
        %v1340 = vsel %vm1279, %v1321, 0.0
        %1341 = vadd.xlane.f32.xlu0 %v1340
        %v1342 = vpop.xlane.xlu0 %1341
        %v1343 = vsel %vm1279, %v1323, 0.0
        %1344 = vadd.xlane.f32.xlu0 %v1343
        %v1345 = vpop.xlane.xlu0 %1344
        %v1346 = vsel %vm1279, %v1325, 0.0
        %1347 = vadd.xlane.f32.xlu0 %v1346
        %v1348 = vpop.xlane.xlu0 %1347
        %v1349 = vsel %vm1279, %v1327, 0.0
        %1350 = vadd.xlane.f32.xlu0 %v1349
        %v1351 = vpop.xlane.xlu0 %1350
        %v1352 = vrcp.pop %v1330
        %v1353 = vrcp.pop %v1333
        %v1354 = vrcp.pop %v1336
        %v1355 = vrcp.pop %v1339
        %v1356 = vrcp.pop %v1342
        %v1357 = vrcp.pop %v1345
        %v1358 = vrcp.pop %v1348
        %v1359 = vrcp.pop %v1351
        %v1360 = vmul.f32 %v1313, %v1352
        %v1361 = vmul.f32 %v1315, %v1353
        %v1362 = vmul.f32 %v1317, %v1354
        %v1363 = vmul.f32 %v1319, %v1355
        %v1364 = vmul.f32 %v1321, %v1356
        %v1365 = vmul.f32 %v1323, %v1357
        %v1366 = vmul.f32 %v1325, %v1358
        %v1367 = vmul.f32 %v1327, %v1359
        %v1368 = vld [vmem:[%s6] sm:$0x1]
        %v1369 = vld [vmem:[%s6 + $0x1] sm:$0x1]
        %v1370 = vld [vmem:[%s6 + $0x2] sm:$0x1]
        %v1371 = vld [vmem:[%s6 + $0x3] sm:$0x1]
        %v1376 = vlaneseq
        %v1377 = vshrl.u32 %v1376, 7
        %v1378 = vsub.s32 0, %v1377
        %v1379 = vrot.slane %v1368, %v1378
        %v1380 = vlaneseq
        %v1381 = vshrl.u32 %v1380, 7
        %v1382 = vsub.s32 0, %v1381
        %v1383 = vrot.slane %v1369, %v1382
        %v1384 = vlaneseq
        %v1385 = vshrl.u32 %v1384, 7
        %v1386 = vsub.s32 0, %v1385
        %v1387 = vrot.slane %v1370, %v1386
        %v1388 = vlaneseq
        %v1389 = vshrl.u32 %v1388, 7
        %v1390 = vsub.s32 0, %v1389
        %v1391 = vrot.slane %v1371, %v1390
        %1392 = vset.pattern.permute.xlu0 0
        %1393 = vperm.xlu0 %1392, %v1379
        %v1394 = vpop.permute.xlu0 %1393
        %1396 = vset.pattern.permute.xlu0 0
        %1397 = vperm.xlu0 %1396, %v1383
        %v1398 = vpop.permute.xlu0 %1397
        %1400 = vset.pattern.permute.xlu0 0
        %1401 = vperm.xlu0 %1400, %v1387
        %v1402 = vpop.permute.xlu0 %1401
        %1404 = vset.pattern.permute.xlu0 0
        %1405 = vperm.xlu0 %1404, %v1391
        %v1406 = vpop.permute.xlu0 %1405
        %v1408 = vmul.f32 %v1360, %v1394
        %v1409 = vmul.f32 %v1361, %v1394
        %v1410 = vmul.f32 %v1362, %v1398
        %v1411 = vmul.f32 %v1363, %v1398
        %v1412 = vmul.f32 %v1364, %v1402
        %v1413 = vmul.f32 %v1365, %v1402
        %v1414 = vmul.f32 %v1366, %v1406
        %v1415 = vmul.f32 %v1367, %v1406
        %v1416 = vadd.f32 %v1408, %v1410
        %v1417 = vadd.f32 %v1409, %v1411
        %v1418 = vadd.f32 %v1416, %v1412
        %v1419 = vadd.f32 %v1417, %v1413
        %v1420 = vadd.f32 %v1418, %v1414
        %v1421 = vadd.f32 %v1419, %v1415
        %s1422 = scalar_lea.vmem %s6, 4
        %v1423 = vld [vmem:[%s1422] sm:$0x1]
        %v1424 = vld [vmem:[%s1422 + $0x1] sm:$0x1]
        %v1425 = vld [vmem:[%s1422 + $0x2] sm:$0x1]
        %v1426 = vld [vmem:[%s1422 + $0x3] sm:$0x1]
        %v1431 = vlaneseq
        %v1432 = vshrl.u32 %v1431, 7
        %v1433 = vsub.s32 0, %v1432
        %v1434 = vrot.slane %v1423, %v1433
        %v1435 = vlaneseq
        %v1436 = vshrl.u32 %v1435, 7
        %v1437 = vsub.s32 0, %v1436
        %v1438 = vrot.slane %v1424, %v1437
        %v1439 = vlaneseq
        %v1440 = vshrl.u32 %v1439, 7
        %v1441 = vsub.s32 0, %v1440
        %v1442 = vrot.slane %v1425, %v1441
        %v1443 = vlaneseq
        %v1444 = vshrl.u32 %v1443, 7
        %v1445 = vsub.s32 0, %v1444
        %v1446 = vrot.slane %v1426, %v1445
        %1447 = vset.pattern.permute.xlu0 0
        %1448 = vperm.xlu0 %1447, %v1434
        %v1449 = vpop.permute.xlu0 %1448
        %1451 = vset.pattern.permute.xlu0 0
        %1452 = vperm.xlu0 %1451, %v1438
        %v1453 = vpop.permute.xlu0 %1452
        %1455 = vset.pattern.permute.xlu0 0
        %1456 = vperm.xlu0 %1455, %v1442
        %v1457 = vpop.permute.xlu0 %1456
        %1459 = vset.pattern.permute.xlu0 0
        %1460 = vperm.xlu0 %1459, %v1446
        %v1461 = vpop.permute.xlu0 %1460
        %v1463 = vmul.f32 %v1360, %v1449
        %v1464 = vmul.f32 %v1361, %v1449
        %v1465 = vmul.f32 %v1362, %v1453
        %v1466 = vmul.f32 %v1363, %v1453
        %v1467 = vmul.f32 %v1364, %v1457
        %v1468 = vmul.f32 %v1365, %v1457
        %v1469 = vmul.f32 %v1366, %v1461
        %v1470 = vmul.f32 %v1367, %v1461
        %v1471 = vadd.f32 %v1463, %v1465
        %v1472 = vadd.f32 %v1464, %v1466
        %v1473 = vadd.f32 %v1471, %v1467
        %v1474 = vadd.f32 %v1472, %v1468
        %v1475 = vadd.f32 %v1473, %v1469
        %v1476 = vadd.f32 %v1474, %v1470
        %s1477 = scalar_lea.vmem %s6, 8
        %v1478 = vld [vmem:[%s1477] sm:$0x1]
        %v1479 = vld [vmem:[%s1477 + $0x1] sm:$0x1]
        %v1480 = vld [vmem:[%s1477 + $0x2] sm:$0x1]
        %v1481 = vld [vmem:[%s1477 + $0x3] sm:$0x1]
        %v1486 = vlaneseq
        %v1487 = vshrl.u32 %v1486, 7
        %v1488 = vsub.s32 0, %v1487
        %v1489 = vrot.slane %v1478, %v1488
        %v1490 = vlaneseq
        %v1491 = vshrl.u32 %v1490, 7
        %v1492 = vsub.s32 0, %v1491
        %v1493 = vrot.slane %v1479, %v1492
        %v1494 = vlaneseq
        %v1495 = vshrl.u32 %v1494, 7
        %v1496 = vsub.s32 0, %v1495
        %v1497 = vrot.slane %v1480, %v1496
        %v1498 = vlaneseq
        %v1499 = vshrl.u32 %v1498, 7
        %v1500 = vsub.s32 0, %v1499
        %v1501 = vrot.slane %v1481, %v1500
        %1502 = vset.pattern.permute.xlu0 0
        %1503 = vperm.xlu0 %1502, %v1489
        %v1504 = vpop.permute.xlu0 %1503
        %1506 = vset.pattern.permute.xlu0 0
        %1507 = vperm.xlu0 %1506, %v1493
        %v1508 = vpop.permute.xlu0 %1507
        %1510 = vset.pattern.permute.xlu0 0
        %1511 = vperm.xlu0 %1510, %v1497
        %v1512 = vpop.permute.xlu0 %1511
        %1514 = vset.pattern.permute.xlu0 0
        %1515 = vperm.xlu0 %1514, %v1501
        %v1516 = vpop.permute.xlu0 %1515
        %v1518 = vmul.f32 %v1360, %v1504
        %v1519 = vmul.f32 %v1361, %v1504
        %v1520 = vmul.f32 %v1362, %v1508
        %v1521 = vmul.f32 %v1363, %v1508
        %v1522 = vmul.f32 %v1364, %v1512
        %v1523 = vmul.f32 %v1365, %v1512
        %v1524 = vmul.f32 %v1366, %v1516
        %v1525 = vmul.f32 %v1367, %v1516
        %v1526 = vadd.f32 %v1518, %v1520
        %v1527 = vadd.f32 %v1519, %v1521
        %v1528 = vadd.f32 %v1526, %v1522
        %v1529 = vadd.f32 %v1527, %v1523
        %v1530 = vadd.f32 %v1528, %v1524
        %v1531 = vadd.f32 %v1529, %v1525
        %s1532 = scalar_lea.vmem %s6, 12
        %v1533 = vld [vmem:[%s1532] sm:$0x1]
        %v1534 = vld [vmem:[%s1532 + $0x1] sm:$0x1]
        %v1535 = vld [vmem:[%s1532 + $0x2] sm:$0x1]
        %v1536 = vld [vmem:[%s1532 + $0x3] sm:$0x1]
        %v1541 = vlaneseq
        %v1542 = vshrl.u32 %v1541, 7
        %v1543 = vsub.s32 0, %v1542
        %v1544 = vrot.slane %v1533, %v1543
        %v1545 = vlaneseq
        %v1546 = vshrl.u32 %v1545, 7
        %v1547 = vsub.s32 0, %v1546
        %v1548 = vrot.slane %v1534, %v1547
        %v1549 = vlaneseq
        %v1550 = vshrl.u32 %v1549, 7
        %v1551 = vsub.s32 0, %v1550
        %v1552 = vrot.slane %v1535, %v1551
        %v1553 = vlaneseq
        %v1554 = vshrl.u32 %v1553, 7
        %v1555 = vsub.s32 0, %v1554
        %v1556 = vrot.slane %v1536, %v1555
        %1557 = vset.pattern.permute.xlu0 0
        %1558 = vperm.xlu0 %1557, %v1544
        %v1559 = vpop.permute.xlu0 %1558
        %1561 = vset.pattern.permute.xlu0 0
        %1562 = vperm.xlu0 %1561, %v1548
        %v1563 = vpop.permute.xlu0 %1562
        %1565 = vset.pattern.permute.xlu0 0
        %1566 = vperm.xlu0 %1565, %v1552
        %v1567 = vpop.permute.xlu0 %1566
        %1569 = vset.pattern.permute.xlu0 0
        %1570 = vperm.xlu0 %1569, %v1556
        %v1571 = vpop.permute.xlu0 %1570
        %v1573 = vmul.f32 %v1360, %v1559
        %v1574 = vmul.f32 %v1361, %v1559
        %v1575 = vmul.f32 %v1362, %v1563
        %v1576 = vmul.f32 %v1363, %v1563
        %v1577 = vmul.f32 %v1364, %v1567
        %v1578 = vmul.f32 %v1365, %v1567
        %v1579 = vmul.f32 %v1366, %v1571
        %v1580 = vmul.f32 %v1367, %v1571
        %v1581 = vadd.f32 %v1573, %v1575
        %v1582 = vadd.f32 %v1574, %v1576
        %v1583 = vadd.f32 %v1581, %v1577
        %v1584 = vadd.f32 %v1582, %v1578
        %v1585 = vadd.f32 %v1583, %v1579
        %v1586 = vadd.f32 %v1584, %v1580
        %v1587 = vpack.c.bf16 %v1421, %v1420
        %v1588 = vpack.c.bf16 %v1476, %v1475
        %v1589 = vpack.c.bf16 %v1531, %v1530
        %v1590 = vpack.c.bf16 %v1586, %v1585
        %v1592 = vsel %vm1279, %v1587, 0
        %1594 = vmatprep.subr.bf16.mxu0 0
        %1595 = vmatpush1.bf16.msra.mxu0 %v867
        %1596 = vmatprep.subr.bf16.mxu0 0
        %1597 = vmatpush1.bf16.msra.mxu0 0
        %1598 = vmatprep.subr.bf16.mxu0 0
        %1599 = vmatpush1.bf16.msra.mxu0 0
        %1600 = vmatprep.subr.bf16.mxu0 0
        %1601 = vmatpush1.bf16.msra.mxu0 0
        %1602 = vmatprep.subr.bf16.mxu0 0
        %1603 = vmatpush1.bf16.msra.mxu0 0
        %1604 = vmatprep.subr.bf16.mxu0 0
        %1605 = vmatpush1.bf16.msra.mxu0 0
        %1606 = vmatprep.subr.bf16.mxu0 0
        %1607 = vmatpush1.bf16.msra.mxu0 0
        %1608 = vmatprep.subr.bf16.mxu0 0
        %1609 = vmatpush1.bf16.msra.mxu0 0
        %1610 = vmatprep.subr.bf16.mxu0 0
        %1611 = vmatpush1.bf16.msra.mxu0 0
        %1612 = vmatprep.subr.bf16.mxu0 0
        %1613 = vmatpush1.bf16.msra.mxu0 0
        %1614 = vmatprep.subr.bf16.mxu0 0
        %1615 = vmatpush1.bf16.msra.mxu0 0
        %1616 = vmatprep.subr.bf16.mxu0 0
        %1617 = vmatpush1.bf16.msra.mxu0 0
        %1618 = vmatprep.subr.bf16.mxu0 0
        %1619 = vmatpush1.bf16.msra.mxu0 0
        %1620 = vmatprep.subr.bf16.mxu0 0
        %1621 = vmatpush1.bf16.msra.mxu0 0
        %1622 = vmatprep.subr.bf16.mxu0 0
        %1623 = vmatpush1.bf16.msra.mxu0 0
        %1624 = vmatprep.subr.bf16.mxu0 0
        %1625 = vmatpush1.bf16.msra.mxu0 0
        %1626 = vmatprep.mubr.bf16.mxu0 0
        %1627 = vmatmul.mubr.bf16.gmra.mrb[0].mxu0 %v1592
        %v1628 = vpop.f32.mrb[0].mxu0
        %v1629 = vadd.f32 0.0, %v1628
        %v1630 = vpop.f32.mrb[0].mxu0
        %v1631 = vpop.f32.mrb[0].mxu0
        %v1632 = vadd.f32 0.0, %v1631
        %v1633 = vpop.f32.mrb[0].mxu0
        %1634 = vdwg.mxu0
        %v1636 = vsel %vm1279, %v1588, 0
        %1638 = vmatprep.subr.bf16.mxu0 0
        %1639 = vmatpush1.bf16.msra.mxu0 %v868
        %1640 = vmatprep.subr.bf16.mxu0 0
        %1641 = vmatpush1.bf16.msra.mxu0 0
        %1642 = vmatprep.subr.bf16.mxu0 0
        %1643 = vmatpush1.bf16.msra.mxu0 0
        %1644 = vmatprep.subr.bf16.mxu0 0
        %1645 = vmatpush1.bf16.msra.mxu0 0
        %1646 = vmatprep.subr.bf16.mxu0 0
        %1647 = vmatpush1.bf16.msra.mxu0 0
        %1648 = vmatprep.subr.bf16.mxu0 0
        %1649 = vmatpush1.bf16.msra.mxu0 0
        %1650 = vmatprep.subr.bf16.mxu0 0
        %1651 = vmatpush1.bf16.msra.mxu0 0
        %1652 = vmatprep.subr.bf16.mxu0 0
        %1653 = vmatpush1.bf16.msra.mxu0 0
        %1654 = vmatprep.subr.bf16.mxu0 0
        %1655 = vmatpush1.bf16.msra.mxu0 0
        %1656 = vmatprep.subr.bf16.mxu0 0
        %1657 = vmatpush1.bf16.msra.mxu0 0
        %1658 = vmatprep.subr.bf16.mxu0 0
        %1659 = vmatpush1.bf16.msra.mxu0 0
        %1660 = vmatprep.subr.bf16.mxu0 0
        %1661 = vmatpush1.bf16.msra.mxu0 0
        %1662 = vmatprep.subr.bf16.mxu0 0
        %1663 = vmatpush1.bf16.msra.mxu0 0
        %1664 = vmatprep.subr.bf16.mxu0 0
        %1665 = vmatpush1.bf16.msra.mxu0 0
        %1666 = vmatprep.subr.bf16.mxu0 0
        %1667 = vmatpush1.bf16.msra.mxu0 0
        %1668 = vmatprep.subr.bf16.mxu0 0
        %1669 = vmatpush1.bf16.msra.mxu0 0
        %1670 = vmatprep.mubr.bf16.mxu0 0
        %1671 = vmatmul.mubr.bf16.gmra.mrb[0].mxu0 %v1636
        %v1672 = vpop.f32.mrb[0].mxu0
        %v1673 = vadd.f32 0.0, %v1672
        %v1674 = vpop.f32.mrb[0].mxu0
        %v1675 = vpop.f32.mrb[0].mxu0
        %v1676 = vadd.f32 0.0, %v1675
        %v1677 = vpop.f32.mrb[0].mxu0
        %1678 = vdwg.mxu0
        %v1680 = vsel %vm1279, %v1589, 0
        %1682 = vmatprep.subr.bf16.mxu0 0
        %1683 = vmatpush1.bf16.msra.mxu0 %v869
        %1684 = vmatprep.subr.bf16.mxu0 0
        %1685 = vmatpush1.bf16.msra.mxu0 0
        %1686 = vmatprep.subr.bf16.mxu0 0
        %1687 = vmatpush1.bf16.msra.mxu0 0
        %1688 = vmatprep.subr.bf16.mxu0 0
        %1689 = vmatpush1.bf16.msra.mxu0 0
        %1690 = vmatprep.subr.bf16.mxu0 0
        %1691 = vmatpush1.bf16.msra.mxu0 0
        %1692 = vmatprep.subr.bf16.mxu0 0
        %1693 = vmatpush1.bf16.msra.mxu0 0
        %1694 = vmatprep.subr.bf16.mxu0 0
        %1695 = vmatpush1.bf16.msra.mxu0 0
        %1696 = vmatprep.subr.bf16.mxu0 0
        %1697 = vmatpush1.bf16.msra.mxu0 0
        %1698 = vmatprep.subr.bf16.mxu0 0
        %1699 = vmatpush1.bf16.msra.mxu0 0
        %1700 = vmatprep.subr.bf16.mxu0 0
        %1701 = vmatpush1.bf16.msra.mxu0 0
        %1702 = vmatprep.subr.bf16.mxu0 0
        %1703 = vmatpush1.bf16.msra.mxu0 0
        %1704 = vmatprep.subr.bf16.mxu0 0
        %1705 = vmatpush1.bf16.msra.mxu0 0
        %1706 = vmatprep.subr.bf16.mxu0 0
        %1707 = vmatpush1.bf16.msra.mxu0 0
        %1708 = vmatprep.subr.bf16.mxu0 0
        %1709 = vmatpush1.bf16.msra.mxu0 0
        %1710 = vmatprep.subr.bf16.mxu0 0
        %1711 = vmatpush1.bf16.msra.mxu0 0
        %1712 = vmatprep.subr.bf16.mxu0 0
        %1713 = vmatpush1.bf16.msra.mxu0 0
        %1714 = vmatprep.mubr.bf16.mxu0 0
        %1715 = vmatmul.mubr.bf16.gmra.mrb[0].mxu0 %v1680
        %v1716 = vpop.f32.mrb[0].mxu0
        %v1717 = vadd.f32 0.0, %v1716
        %v1718 = vpop.f32.mrb[0].mxu0
        %v1719 = vpop.f32.mrb[0].mxu0
        %v1720 = vadd.f32 0.0, %v1719
        %v1721 = vpop.f32.mrb[0].mxu0
        %1722 = vdwg.mxu0
        %v1724 = vsel %vm1279, %v1590, 0
        %1726 = vmatprep.subr.bf16.mxu0 0
        %1727 = vmatpush1.bf16.msra.mxu0 %v870
        %1728 = vmatprep.subr.bf16.mxu0 0
        %1729 = vmatpush1.bf16.msra.mxu0 0
        %1730 = vmatprep.subr.bf16.mxu0 0
        %1731 = vmatpush1.bf16.msra.mxu0 0
        %1732 = vmatprep.subr.bf16.mxu0 0
        %1733 = vmatpush1.bf16.msra.mxu0 0
        %1734 = vmatprep.subr.bf16.mxu0 0
        %1735 = vmatpush1.bf16.msra.mxu0 0
        %1736 = vmatprep.subr.bf16.mxu0 0
        %1737 = vmatpush1.bf16.msra.mxu0 0
        %1738 = vmatprep.subr.bf16.mxu0 0
        %1739 = vmatpush1.bf16.msra.mxu0 0
        %1740 = vmatprep.subr.bf16.mxu0 0
        %1741 = vmatpush1.bf16.msra.mxu0 0
        %1742 = vmatprep.subr.bf16.mxu0 0
        %1743 = vmatpush1.bf16.msra.mxu0 0
        %1744 = vmatprep.subr.bf16.mxu0 0
        %1745 = vmatpush1.bf16.msra.mxu0 0
        %1746 = vmatprep.subr.bf16.mxu0 0
        %1747 = vmatpush1.bf16.msra.mxu0 0
        %1748 = vmatprep.subr.bf16.mxu0 0
        %1749 = vmatpush1.bf16.msra.mxu0 0
        %1750 = vmatprep.subr.bf16.mxu0 0
        %1751 = vmatpush1.bf16.msra.mxu0 0
        %1752 = vmatprep.subr.bf16.mxu0 0
        %1753 = vmatpush1.bf16.msra.mxu0 0
        %1754 = vmatprep.subr.bf16.mxu0 0
        %1755 = vmatpush1.bf16.msra.mxu0 0
        %1756 = vmatprep.subr.bf16.mxu0 0
        %1757 = vmatpush1.bf16.msra.mxu0 0
        %1758 = vmatprep.mubr.bf16.mxu0 0
        %1759 = vmatmul.mubr.bf16.gmra.mrb[0].mxu0 %v1724
        %v1760 = vpop.f32.mrb[0].mxu0
        %v1761 = vadd.f32 0.0, %v1760
        %v1762 = vpop.f32.mrb[0].mxu0
        %v1763 = vpop.f32.mrb[0].mxu0
        %v1764 = vadd.f32 0.0, %v1763
        %v1765 = vpop.f32.mrb[0].mxu0
        %1766 = vdwg.mxu0
        %1769 = vrot.lane.b32.xlu0 %v1673, 32
        %v1770 = vpop.permute.xlu0 %1769
        %1771 = vrot.lane.b32.xlu0 %v1676, 32
        %v1772 = vpop.permute.xlu0 %1771
        %1777 = vrot.lane.b32.xlu0 %v1717, 64
        %v1778 = vpop.permute.xlu0 %1777
        %1779 = vrot.lane.b32.xlu0 %v1720, 64
        %v1780 = vpop.permute.xlu0 %1779
        %1785 = vrot.lane.b32.xlu0 %v1761, 96
        %v1786 = vpop.permute.xlu0 %1785
        %1787 = vrot.lane.b32.xlu0 %v1764, 96
        %v1788 = vpop.permute.xlu0 %1787
        %v1791 = vsel %vm871, %v1629, %v1770
        %v1792 = vsel %vm871, %v1632, %v1772
        %vm1793 = vcmask 523264
        %v1794 = vsel %vm1793, %v1791, %v1778
        %v1795 = vsel %vm1793, %v1792, %v1780
        %vm1796 = vcmask 785408
        %v1797 = vsel %vm1796, %v1794, %v1786
        %v1798 = vsel %vm1796, %v1795, %v1788
        %v1799 = vpack.c.bf16 %v1798, %v1797
        %v1800 = vld [vmem:[%s7] sm:$0xf]
        %v1801 = vld [vmem:[%s7 + $0x4] sm:$0xf]
        %v1802 = vld [vmem:[%s7 + $0x8] sm:$0xf]
        %v1803 = vld [vmem:[%s7 + $0xc] sm:$0xf]
        %v1804 = vld [vmem:[%s7 + $0x10] sm:$0xf]
        %v1805 = vld [vmem:[%s7 + $0x14] sm:$0xf]
        %v1806 = vld [vmem:[%s7 + $0x18] sm:$0xf]
        %v1807 = vld [vmem:[%s7 + $0x1c] sm:$0xf]
        %v1808 = vld [vmem:[%s7 + $0x20] sm:$0xf]
        %v1809 = vld [vmem:[%s7 + $0x24] sm:$0xf]
        %v1810 = vld [vmem:[%s7 + $0x28] sm:$0xf]
        %v1811 = vld [vmem:[%s7 + $0x2c] sm:$0xf]
        %v1812 = vld [vmem:[%s7 + $0x30] sm:$0xf]
        %v1813 = vld [vmem:[%s7 + $0x34] sm:$0xf]
        %v1814 = vld [vmem:[%s7 + $0x38] sm:$0xf]
        %v1815 = vld [vmem:[%s7 + $0x3c] sm:$0xf]
        %v1816 = vld [vmem:[%s8] sm:$0x1]
        %v1818 = vlaneseq
        %v1819 = vshrl.u32 %v1818, 7
        %v1820 = vsub.s32 0, %v1819
        %v1821 = vrot.slane %v1816, %v1820
        %v1839 = vunpack.c.l.b16 %v1800
        %v1840 = vunpack.c.l.b16 %v1801
        %v1841 = vunpack.c.l.b16 %v1802
        %v1842 = vunpack.c.l.b16 %v1803
        %v1843 = vunpack.c.l.b16 %v1804
        %v1844 = vunpack.c.l.b16 %v1805
        %v1845 = vunpack.c.l.b16 %v1806
        %v1846 = vunpack.c.l.b16 %v1807
        %v1847 = vunpack.c.l.b16 %v1808
        %v1848 = vunpack.c.l.b16 %v1809
        %v1849 = vunpack.c.l.b16 %v1810
        %v1850 = vunpack.c.l.b16 %v1811
        %v1851 = vunpack.c.l.b16 %v1812
        %v1852 = vunpack.c.l.b16 %v1813
        %v1853 = vunpack.c.l.b16 %v1814
        %v1854 = vunpack.c.l.b16 %v1815
        %v1855 = vpack.c.b16 %v1840, %v1839
        %v1856 = vpack.c.b16 %v1842, %v1841
        %v1857 = vpack.c.b16 %v1844, %v1843
        %v1858 = vpack.c.b16 %v1846, %v1845
        %v1859 = vpack.c.b16 %v1848, %v1847
        %v1860 = vpack.c.b16 %v1850, %v1849
        %v1861 = vpack.c.b16 %v1852, %v1851
        %v1862 = vpack.c.b16 %v1854, %v1853
        %1871 = vmatprep.subr.bf16.mxu0 0
        %1872 = vmatpush1.bf16.msra.mxu0 %v1855
        %1873 = vmatprep.subr.bf16.mxu0 0
        %1874 = vmatpush1.bf16.msra.mxu0 %v1856
        %1875 = vmatprep.subr.bf16.mxu0 0
        %1876 = vmatpush1.bf16.msra.mxu0 %v1857
        %1877 = vmatprep.subr.bf16.mxu0 0
        %1878 = vmatpush1.bf16.msra.mxu0 %v1858
        %1879 = vmatprep.subr.bf16.mxu0 0
        %1880 = vmatpush1.bf16.msra.mxu0 %v1859
        %1881 = vmatprep.subr.bf16.mxu0 0
        %1882 = vmatpush1.bf16.msra.mxu0 %v1860
        %1883 = vmatprep.subr.bf16.mxu0 0
        %1884 = vmatpush1.bf16.msra.mxu0 %v1861
        %1885 = vmatprep.subr.bf16.mxu0 0
        %1886 = vmatpush1.bf16.msra.mxu0 %v1862
        %1887 = vmatprep.subr.bf16.mxu0 0
        %1888 = vmatpush1.bf16.msra.mxu0 0
        %1889 = vmatprep.subr.bf16.mxu0 0
        %1890 = vmatpush1.bf16.msra.mxu0 0
        %1891 = vmatprep.subr.bf16.mxu0 0
        %1892 = vmatpush1.bf16.msra.mxu0 0
        %1893 = vmatprep.subr.bf16.mxu0 0
        %1894 = vmatpush1.bf16.msra.mxu0 0
        %1895 = vmatprep.subr.bf16.mxu0 0
        %1896 = vmatpush1.bf16.msra.mxu0 0
        %1897 = vmatprep.subr.bf16.mxu0 0
        %1898 = vmatpush1.bf16.msra.mxu0 0
        %1899 = vmatprep.subr.bf16.mxu0 0
        %1900 = vmatpush1.bf16.msra.mxu0 0
        %1901 = vmatprep.subr.bf16.mxu0 0
        %1902 = vmatpush1.bf16.msra.mxu0 0
        %1903 = vmatprep.mubr.bf16.mxu0 0
        %1904 = vmatmul.mubr.bf16.gmra.mrb[0].mxu0 %v1799
        %v1905 = vpop.f32.mrb[0].mxu0
        %v1906 = vadd.f32 %v1821, %v1905
        %v1907 = vpop.f32.mrb[0].mxu0
        %v1908 = vpop.f32.mrb[0].mxu0
        %v1909 = vadd.f32 %v1821, %v1908
        %v1910 = vpop.f32.mrb[0].mxu0
        %1911 = vdwg.mxu0
        %1912 = vst [vmem:[%s451] sm:$0xff] %v1906
        %1913 = vst [vmem:[%s451 + $0x8] sm:$0xff] %v1909
        %s1914 = sand.u32 %s253, 1
        %s1915 = scalar_lea.sflag [#allocation6], %s1914
        %s1916 = sand.u32 %s253, 1
        %s1917 = smul.addr %s1916, 16
        %s1918 = scalar_lea.vmem [#allocation13], %s1917
        // Predicated region
        $region81: #{tpu_custom_call.1} parent=55 // pred_check
          %p1919 = pneg %p263
        $region82: #{tpu_custom_call.1} parent=55 // pred_check_branch
          %1921 = sbr.rel (%p1919) target = $region84
        $region83: #{tpu_custom_call.1} parent=55 // pred_region
          %s1922 = smul.u32 2, %s35
          %s1924 = ssub.s32 256, 256
          %1925 = vsyncadd %s1915, %s1924
          %s1926 = smul.addr %s34, 2
          %s1927 = sadd.s32 %s1922, %s1926
          %s1928 = smul.addr %s1927, 128
          %s1929 = scalar_lea.hbm %s9, %s1928
          %s1930 = sshll.u32 %s1918, 4
          %s1931 = int_to_ptr.vmem [resolvable:$true] %s1930
          %1936 = dma.vmem_to_hbm [thread:$0]  %s1931, 256, %s1929, %s1915, 128, 128, 8
        $region84: #{tpu_custom_call.1} parent=55 // pred_fallthru
          _
      $region56: #{tpu_custom_call.1} parent=5 // pred_fallthru
        _
      %p1937 = scmp.le.s32.totalorder 2, %s25
      // Predicated region
      $region85: #{tpu_custom_call.1} parent=5 // pred_check
        %p1938 = pneg %p1937
      $region86: #{tpu_custom_call.1} parent=5 // pred_check_branch
        %1940 = sbr.rel (%p1938) target = $region88
      $region87: #{tpu_custom_call.1} parent=5 // pred_region
        %s1941 = ssub.s32 %s25, 2
        // Predicated region
        $region89: #{tpu_custom_call.1} parent=87 // pred_check
          %p1942 = pneg %p269
        $region90: #{tpu_custom_call.1} parent=87 // pred_check_branch
          %1944 = sbr.rel (%p1942) target = $region92
        $region91: #{tpu_custom_call.1} parent=87 // pred_region
          %s1945 = sand.u32 %s254, 1
          %s1946 = scalar_lea.sflag [#allocation6], %s1945
          %s1947 = sand.u32 %s254, 1
          %s1948 = smul.addr %s1947, 16
          %s1949 = scalar_lea.vmem [#allocation13], %s1948
          %1950 = dma.done %s1946, 256
        $region92: #{tpu_custom_call.1} parent=87 // pred_fallthru
          _
      $region88: #{tpu_custom_call.1} parent=5 // pred_fallthru
        _
    $region6: #{tpu_custom_call.1} parent=1 // loop_footer
      %s29 = sadd.s32 1, %s25
    $region7: #{tpu_custom_call.1} parent=1 // loop_footer_branch
      %24 = sbr.rel target = $region3
    $region8: #{tpu_custom_call.1} parent=1 // loop_exit
      _
    %1951 = vsyncpa [#allocation5], 1
    %s1952 = scalar_lea.sflag [#allocation5], 1
    %1953 = vsyncpa %s1952, 1
    %1954 = vsyncpa [#allocation8], 1
    %s1955 = scalar_lea.sflag [#allocation8], 1
    %1956 = vsyncpa %s1955, 1
    %1957 = vsyncpa [#allocation11], 1
    %1958 = vsyncpa [#allocation6], 1
    %s1959 = scalar_lea.sflag [#allocation6], 1
    %1960 = vsyncpa %s1959, 1

</llo_original>
